<compile_context>
chip_gen: v7x
topology: tpu7x:2x2x1
jax: 0.10.0
libtpu: 0.0.40
codegen_flags: <defaults>
</compile_context>

<pallas_src>
import functools

import jax
import jax.numpy as jnp
import numpy as np
from jax import lax
from jax.experimental import pallas as pl
from jax.experimental.pallas import tpu as pltpu


# ---------------------------------------------------------------------------
# Pallas kernel: multi-layer LSTM, entire sequence per kernel invocation.
# refs = (x_2d, [w_ih_T, w_hh_T, b] * nlayers, out_2d, gx_scratch)
#   x_2d   : (T*B, D)   time-major rows, row index = t*B + b
#   out_2d : (T*B, H)   top-layer hidden states (also reused as the
#                       inter-layer sequence buffer, overwritten per layer)
#   gx_sc  : (T*B, 4H)  hoisted input-to-hidden gate pre-activations
# ---------------------------------------------------------------------------
def _lstm_kernel(nlayers, batch, x_ref, *refs):
    weight_refs = refs[: 3 * nlayers]
    out_ref = refs[3 * nlayers]
    gx_sc = refs[3 * nlayers + 1]

    TB, H = out_ref.shape
    B = batch
    T = TB // B

    for l in range(nlayers):                      # nlayers is static -> unrolled
        w_ih_T = weight_refs[3 * l][...]          # (Din, 4H)
        w_hh_T = weight_refs[3 * l + 1][...]      # (H,   4H)
        bias = weight_refs[3 * l + 2][...]        # (1,   4H)  (b_ih + b_hh)

        # Layer input sequence: raw x for layer 0, previous layer's hidden
        # sequence (already sitting in out_ref) afterwards.
        seq_in = x_ref[...].astype(jnp.float32) if l == 0 else out_ref[...]

        # Hoisted input-to-hidden GEMM over all T steps: one MXU matmul
        # (T*B, Din) @ (Din, 4H) + bias, stored to VMEM scratch.
        gx_sc[...] = (
            jnp.dot(seq_in, w_ih_T, preferred_element_type=jnp.float32) + bias
        )

        def step(t, carry, w_hh_T=w_hh_T):
            h_prev, c_prev = carry                # (B, H) f32, zero-initialized
            gates = gx_sc[pl.ds(t * B, B), :] + jnp.dot(
                h_prev, w_hh_T, preferred_element_type=jnp.float32
            )                                     # (B, 4H), PyTorch order i,f,g,o
            sig = jax.nn.sigmoid(gates)           # lane-wide EUP
            th = jnp.tanh(gates)                  # lane-wide EUP
            i_g = sig[:, 0:H]
            f_g = sig[:, H:2 * H]
            g_g = th[:, 2 * H:3 * H]
            o_g = sig[:, 3 * H:4 * H]
            c_new = f_g * c_prev + i_g * g_g
            h_new = o_g * jnp.tanh(c_new)
            out_ref[pl.ds(t * B, B), :] = h_new.astype(out_ref.dtype)
            return (h_new, c_new)

        zeros = jnp.zeros((B, H), jnp.float32)    # init_hidden: zero (h, c)
        lax.fori_loop(0, T, step, (zeros, zeros), unroll=True)


# ---------------------------------------------------------------------------
# Wrapper: single-step grid, whole arrays resident in VMEM.
# ---------------------------------------------------------------------------
def lstm_pallas(x_btd, params, hidden):
    B, T, D = x_btd.shape
    nlayers = len(params)
    H = hidden

    # Time-major, flattened to 2D (row t*B + b); XLA fuses this with the
    # upstream concatenate — total data is a few KB.
    x_2d = jnp.transpose(x_btd, (1, 0, 2)).reshape(T * B, D)

    flat_weights = []
    in_specs = [pl.BlockSpec((T * B, D), lambda i: (0, 0))]
    for (w_ih, w_hh, b_ih, b_hh) in params:
        w_ih_T = jnp.transpose(w_ih)                  # (Din, 4H)
        w_hh_T = jnp.transpose(w_hh)                  # (H,   4H)
        b = (b_ih + b_hh).reshape(1, 4 * H)           # (1,   4H)
        flat_weights += [w_ih_T, w_hh_T, b]
        in_specs += [
            pl.BlockSpec(w_ih_T.shape, lambda i: (0, 0)),
            pl.BlockSpec(w_hh_T.shape, lambda i: (0, 0)),
            pl.BlockSpec(b.shape, lambda i: (0, 0)),
        ]

    out_2d = pl.pallas_call(
        functools.partial(_lstm_kernel, nlayers, B),
        out_shape=jax.ShapeDtypeStruct((T * B, H), jnp.float32),
        grid_spec=pltpu.PrefetchScalarGridSpec(
            num_scalar_prefetch=0,
            grid=(1,),
            in_specs=in_specs,
            out_specs=pl.BlockSpec((T * B, H), lambda i: (0, 0)),
            scratch_shapes=[
                pltpu.VMEM((T * B, 4 * H), jnp.float32),  # hoisted x@W_ih gates
            ],
        ),
        compiler_params=pltpu.CompilerParams(
            dimension_semantics=("arbitrary",)),
    )(x_2d, *flat_weights)

    return out_2d                                     # (T*B, H), row = t*B + b


# ---------------------------------------------------------------------------
# Glue: parameter init, pack_padded_sequence(...).data equivalent, forward.
# ---------------------------------------------------------------------------
def init_lstm_params(key, in_dim, hidden, nlayers):
    """PyTorch-style uniform(-1/sqrt(H), 1/sqrt(H)) init, deterministic."""
    params = []
    k = 1.0 / np.sqrt(hidden)
    keys = jax.random.split(key, nlayers * 4)
    for l in range(nlayers):
        din = in_dim if l == 0 else hidden
        w_ih = jax.random.uniform(keys[4 * l + 0], (4 * hidden, din), jnp.float32, -k, k)
        w_hh = jax.random.uniform(keys[4 * l + 1], (4 * hidden, hidden), jnp.float32, -k, k)
        b_ih = jax.random.uniform(keys[4 * l + 2], (4 * hidden,), jnp.float32, -k, k)
        b_hh = jax.random.uniform(keys[4 * l + 3], (4 * hidden,), jnp.float32, -k, k)
        params.append((w_ih, w_hh, b_ih, b_hh))
    return params


def _packed_row_indices(rec_lens, batch):
    """Flat row indices (into the (T*B, H) time-major output) reproducing
    PackedSequence.data ordering: for each t, the valid batch rows.  Requires
    rec_lens sorted descending (pack_padded_sequence enforce_sorted)."""
    idx = []
    for t in range(max(rec_lens)):
        bs = sum(1 for L in rec_lens if L > t)
        idx.extend(t * batch + b for b in range(bs))
    return np.asarray(idx, dtype=np.int32)


def recipe_encoder_forward(params, hidden, ingredient_feats, recipes_v,
                           rec_lens, use_teacherF=False):
    if use_teacherF:
        # TODO(synk): teacher-forcing branch uses host-side random.random()
        # scheduled sampling; no clean deterministic Pallas equivalent here.
        raise NotImplementedError("teacher-forcing branch not implemented")
    # recipes_v_i = torch.cat((ingredient_feats, recipes_v), dim=1)
    x = jnp.concatenate((ingredient_feats, recipes_v), axis=1)   # (B, T, D)
    B = x.shape[0]
    # LSTM over the padded sequence (padding is trailing, so valid positions
    # match the packed-LSTM outputs exactly), then one device gather for the
    # packed data.
    out_2d = lstm_pallas(x, params, hidden)                      # (T*B, H)
    idx = jnp.asarray(_packed_row_indices(rec_lens, B))
    return jnp.take(out_2d, idx, axis=0)                         # (sum(lens), H)


if __name__ == "__main__":
    # Small shapes consistent with the module:
    #   recipe_inDim = 32, recipe_hiddens = 32, recipe_nlayers = 2
    B, T_ing, T_rec = 2, 1, 7
    D, H, NLAYERS = 32, 32, 2

    key = jax.random.PRNGKey(0)
    kp, k1, k2 = jax.random.split(key, 3)

    params = init_lstm_params(kp, D, H, NLAYERS)
    ingredient_feats = jax.random.normal(k1, (B, T_ing, D), jnp.float32)
    recipes_v = jax.random.normal(k2, (B, T_rec, D), jnp.float32)
    rec_lens = [T_ing + T_rec, 5]   # sorted descending (pack_padded_sequence)

    out = recipe_encoder_forward(params, H, ingredient_feats, recipes_v,
                                 rec_lens, use_teacherF=False)
    out = jax.block_until_ready(out)

    assert out.shape == (sum(rec_lens), H), out.shape
    assert bool(jnp.all(jnp.isfinite(out)))
    print("KERNEL_OK")
</pallas_src>

<mosaic_0001>
module attributes {stable_mosaic.version = 11 : i64} {
  func.func @_lstm_kernel(%arg0: i32, %arg1: memref<16x32xf32, #tpu.memory_space<vmem>>, %arg2: memref<32x128xf32, #tpu.memory_space<vmem>>, %arg3: memref<32x128xf32, #tpu.memory_space<vmem>>, %arg4: memref<1x128xf32, #tpu.memory_space<vmem>>, %arg5: memref<32x128xf32, #tpu.memory_space<vmem>>, %arg6: memref<32x128xf32, #tpu.memory_space<vmem>>, %arg7: memref<1x128xf32, #tpu.memory_space<vmem>>, %arg8: memref<16x32xf32, #tpu.memory_space<vmem>>, %arg9: memref<16x128xf32, #tpu.memory_space<vmem>>) attributes {dimension_semantics = [#tpu.dimension_semantics<arbitrary>], iteration_bounds = array<i64: 1>, scalar_prefetch = 0 : i64, scratch_operands = 1 : i64, tpu.core_type = #tpu.core_type<tc>, window_params = [{pipeline_mode = #tpu.pipeline_mode<synchronous>, transform_indices = @transform_0, window_bounds = array<i64: 16, 32>}, {pipeline_mode = #tpu.pipeline_mode<synchronous>, transform_indices = @transform_1, window_bounds = array<i64: 32, 128>}, {pipeline_mode = #tpu.pipeline_mode<synchronous>, transform_indices = @transform_2, window_bounds = array<i64: 32, 128>}, {pipeline_mode = #tpu.pipeline_mode<synchronous>, transform_indices = @transform_3, window_bounds = array<i64: 1, 128>}, {pipeline_mode = #tpu.pipeline_mode<synchronous>, transform_indices = @transform_4, window_bounds = array<i64: 32, 128>}, {pipeline_mode = #tpu.pipeline_mode<synchronous>, transform_indices = @transform_5, window_bounds = array<i64: 32, 128>}, {pipeline_mode = #tpu.pipeline_mode<synchronous>, transform_indices = @transform_6, window_bounds = array<i64: 1, 128>}, {pipeline_mode = #tpu.pipeline_mode<synchronous>, transform_indices = @transform_7, window_bounds = array<i64: 16, 32>}]} {
    %c0 = arith.constant 0 : index
    %c0_0 = arith.constant 0 : index
    %0 = vector.load %arg2[%c0, %c0_0] : memref<32x128xf32, #tpu.memory_space<vmem>>, vector<32x128xf32>
    %c0_1 = arith.constant 0 : index
    %c0_2 = arith.constant 0 : index
    %1 = vector.load %arg3[%c0_1, %c0_2] : memref<32x128xf32, #tpu.memory_space<vmem>>, vector<32x128xf32>
    %c0_3 = arith.constant 0 : index
    %c0_4 = arith.constant 0 : index
    %2 = vector.load %arg4[%c0_3, %c0_4] : memref<1x128xf32, #tpu.memory_space<vmem>>, vector<1x128xf32>
    %c0_5 = arith.constant 0 : index
    %c0_6 = arith.constant 0 : index
    %3 = vector.load %arg1[%c0_5, %c0_6] : memref<16x32xf32, #tpu.memory_space<vmem>>, vector<16x32xf32>
    %cst = arith.constant dense<0.000000e+00> : vector<16x128xf32>
    %4 = tpu.matmul %3, %0, %cst {dimension_numbers = #tpu.dot_dimension_numbers<[1], [0], [0], [1], [0, 0, 1, 1], [], []>} : vector<16x32xf32>, vector<32x128xf32>, vector<16x128xf32> -> vector<16x128xf32>
    %5 = vector.broadcast %2 : vector<1x128xf32> to vector<16x128xf32>
    %6 = arith.addf %4, %5 : vector<16x128xf32>
    %c0_7 = arith.constant 0 : index
    %c0_8 = arith.constant 0 : index
    %7 = vector.load %arg9[%c0_7, %c0_8] : memref<16x128xf32, #tpu.memory_space<vmem>>, vector<16x128xf32>
    tpu.vector_store %arg9[%c0_7, %c0_8], %6 {strides = array<i32>} : memref<16x128xf32, #tpu.memory_space<vmem>>, vector<16x128xf32>,
    %cst_9 = arith.constant 0.000000e+00 : f32
    %8 = vector.broadcast %cst_9 : f32 to vector<2x32xf32>
    %c0_i32 = arith.constant 0 : i32
    %c2_i32 = arith.constant 2 : i32
    %9 = arith.muli %c0_i32, %c2_i32 : i32
    %10 = arith.index_cast %9 : i32 to index
    %c0_10 = arith.constant 0 : index
    %11 = vector.load %arg9[%10, %c0_10] : memref<16x128xf32, #tpu.memory_space<vmem>>, vector<2x128xf32>
    %cst_11 = arith.constant dense<0.000000e+00> : vector<2x128xf32>
    %12 = tpu.matmul %8, %1, %cst_11 {dimension_numbers = #tpu.dot_dimension_numbers<[1], [0], [0], [1], [0, 0, 1, 1], [], []>} : vector<2x32xf32>, vector<32x128xf32>, vector<2x128xf32> -> vector<2x128xf32>
    %13 = arith.addf %11, %12 : vector<2x128xf32>
    %14 = arith.negf %13 : vector<2x128xf32>
    %15 = math.exp %14 : vector<2x128xf32>
    %cst_12 = arith.constant 1.000000e+00 : f32
    %16 = vector.broadcast %cst_12 : f32 to vector<2x128xf32>
    %17 = arith.addf %16, %15 : vector<2x128xf32>
    %18 = arith.divf %16, %17 : vector<2x128xf32>
    %19 = math.tanh %13 : vector<2x128xf32>
    %20 = vector.extract_strided_slice %18 {offsets = [0, 0], sizes = [2, 32], strides = [1, 1]} : vector<2x128xf32> to vector<2x32xf32>
    %21 = vector.extract_strided_slice %18 {offsets = [0, 32], sizes = [2, 32], strides = [1, 1]} : vector<2x128xf32> to vector<2x32xf32>
    %22 = vector.extract_strided_slice %19 {offsets = [0, 64], sizes = [2, 32], strides = [1, 1]} : vector<2x128xf32> to vector<2x32xf32>
    %23 = vector.extract_strided_slice %18 {offsets = [0, 96], sizes = [2, 32], strides = [1, 1]} : vector<2x128xf32> to vector<2x32xf32>
    %24 = arith.mulf %21, %8 : vector<2x32xf32>
    %25 = arith.mulf %20, %22 : vector<2x32xf32>
    %26 = arith.addf %24, %25 : vector<2x32xf32>
    %27 = math.tanh %26 : vector<2x32xf32>
    %28 = arith.mulf %23, %27 : vector<2x32xf32>
    %c2_i32_13 = arith.constant 2 : i32
    %29 = arith.muli %c0_i32, %c2_i32_13 : i32
    %30 = arith.index_cast %29 : i32 to index
    %c0_14 = arith.constant 0 : index
    %31 = vector.load %arg8[%30, %c0_14] : memref<16x32xf32, #tpu.memory_space<vmem>>, vector<2x32xf32>
    tpu.vector_store %arg8[%30, %c0_14], %28 {strides = array<i32>} : memref<16x32xf32, #tpu.memory_space<vmem>>, vector<2x32xf32>,
    %c1_i32 = arith.constant 1 : i32
    %c2_i32_15 = arith.constant 2 : i32
    %32 = arith.muli %c1_i32, %c2_i32_15 : i32
    %33 = arith.index_cast %32 : i32 to index
    %c0_16 = arith.constant 0 : index
    %34 = vector.load %arg9[%33, %c0_16] : memref<16x128xf32, #tpu.memory_space<vmem>>, vector<2x128xf32>
    %cst_17 = arith.constant dense<0.000000e+00> : vector<2x128xf32>
    %35 = tpu.matmul %28, %1, %cst_17 {dimension_numbers = #tpu.dot_dimension_numbers<[1], [0], [0], [1], [0, 0, 1, 1], [], []>} : vector<2x32xf32>, vector<32x128xf32>, vector<2x128xf32> -> vector<2x128xf32>
    %36 = arith.addf %34, %35 : vector<2x128xf32>
    %37 = arith.negf %36 : vector<2x128xf32>
    %38 = math.exp %37 : vector<2x128xf32>
    %cst_18 = arith.constant 1.000000e+00 : f32
    %39 = vector.broadcast %cst_18 : f32 to vector<2x128xf32>
    %40 = arith.addf %39, %38 : vector<2x128xf32>
    %41 = arith.divf %39, %40 : vector<2x128xf32>
    %42 = math.tanh %36 : vector<2x128xf32>
    %43 = vector.extract_strided_slice %41 {offsets = [0, 0], sizes = [2, 32], strides = [1, 1]} : vector<2x128xf32> to vector<2x32xf32>
    %44 = vector.extract_strided_slice %41 {offsets = [0, 32], sizes = [2, 32], strides = [1, 1]} : vector<2x128xf32> to vector<2x32xf32>
    %45 = vector.extract_strided_slice %42 {offsets = [0, 64], sizes = [2, 32], strides = [1, 1]} : vector<2x128xf32> to vector<2x32xf32>
    %46 = vector.extract_strided_slice %41 {offsets = [0, 96], sizes = [2, 32], strides = [1, 1]} : vector<2x128xf32> to vector<2x32xf32>
    %47 = arith.mulf %44, %26 : vector<2x32xf32>
    %48 = arith.mulf %43, %45 : vector<2x32xf32>
    %49 = arith.addf %47, %48 : vector<2x32xf32>
    %50 = math.tanh %49 : vector<2x32xf32>
    %51 = arith.mulf %46, %50 : vector<2x32xf32>
    %c2_i32_19 = arith.constant 2 : i32
    %52 = arith.muli %c1_i32, %c2_i32_19 : i32
    %53 = arith.index_cast %52 : i32 to index
    %c0_20 = arith.constant 0 : index
    %54 = vector.load %arg8[%53, %c0_20] : memref<16x32xf32, #tpu.memory_space<vmem>>, vector<2x32xf32>
    tpu.vector_store %arg8[%53, %c0_20], %51 {strides = array<i32>} : memref<16x32xf32, #tpu.memory_space<vmem>>, vector<2x32xf32>,
    %c2_i32_21 = arith.constant 2 : i32
    %c2_i32_22 = arith.constant 2 : i32
    %55 = arith.muli %c2_i32_21, %c2_i32_22 : i32
    %56 = arith.index_cast %55 : i32 to index
    %c0_23 = arith.constant 0 : index
    %57 = vector.load %arg9[%56, %c0_23] : memref<16x128xf32, #tpu.memory_space<vmem>>, vector<2x128xf32>
    %cst_24 = arith.constant dense<0.000000e+00> : vector<2x128xf32>
    %58 = tpu.matmul %51, %1, %cst_24 {dimension_numbers = #tpu.dot_dimension_numbers<[1], [0], [0], [1], [0, 0, 1, 1], [], []>} : vector<2x32xf32>, vector<32x128xf32>, vector<2x128xf32> -> vector<2x128xf32>
    %59 = arith.addf %57, %58 : vector<2x128xf32>
    %60 = arith.negf %59 : vector<2x128xf32>
    %61 = math.exp %60 : vector<2x128xf32>
    %cst_25 = arith.constant 1.000000e+00 : f32
    %62 = vector.broadcast %cst_25 : f32 to vector<2x128xf32>
    %63 = arith.addf %62, %61 : vector<2x128xf32>
    %64 = arith.divf %62, %63 : vector<2x128xf32>
    %65 = math.tanh %59 : vector<2x128xf32>
    %66 = vector.extract_strided_slice %64 {offsets = [0, 0], sizes = [2, 32], strides = [1, 1]} : vector<2x128xf32> to vector<2x32xf32>
    %67 = vector.extract_strided_slice %64 {offsets = [0, 32], sizes = [2, 32], strides = [1, 1]} : vector<2x128xf32> to vector<2x32xf32>
    %68 = vector.extract_strided_slice %65 {offsets = [0, 64], sizes = [2, 32], strides = [1, 1]} : vector<2x128xf32> to vector<2x32xf32>
    %69 = vector.extract_strided_slice %64 {offsets = [0, 96], sizes = [2, 32], strides = [1, 1]} : vector<2x128xf32> to vector<2x32xf32>
    %70 = arith.mulf %67, %49 : vector<2x32xf32>
    %71 = arith.mulf %66, %68 : vector<2x32xf32>
    %72 = arith.addf %70, %71 : vector<2x32xf32>
    %73 = math.tanh %72 : vector<2x32xf32>
    %74 = arith.mulf %69, %73 : vector<2x32xf32>
    %c2_i32_26 = arith.constant 2 : i32
    %75 = arith.muli %c2_i32_21, %c2_i32_26 : i32
    %76 = arith.index_cast %75 : i32 to index
    %c0_27 = arith.constant 0 : index
    %77 = vector.load %arg8[%76, %c0_27] : memref<16x32xf32, #tpu.memory_space<vmem>>, vector<2x32xf32>
    tpu.vector_store %arg8[%76, %c0_27], %74 {strides = array<i32>} : memref<16x32xf32, #tpu.memory_space<vmem>>, vector<2x32xf32>,
    %c3_i32 = arith.constant 3 : i32
    %c2_i32_28 = arith.constant 2 : i32
    %78 = arith.muli %c3_i32, %c2_i32_28 : i32
    %79 = arith.index_cast %78 : i32 to index
    %c0_29 = arith.constant 0 : index
    %80 = vector.load %arg9[%79, %c0_29] : memref<16x128xf32, #tpu.memory_space<vmem>>, vector<2x128xf32>
    %cst_30 = arith.constant dense<0.000000e+00> : vector<2x128xf32>
    %81 = tpu.matmul %74, %1, %cst_30 {dimension_numbers = #tpu.dot_dimension_numbers<[1], [0], [0], [1], [0, 0, 1, 1], [], []>} : vector<2x32xf32>, vector<32x128xf32>, vector<2x128xf32> -> vector<2x128xf32>
    %82 = arith.addf %80, %81 : vector<2x128xf32>
    %83 = arith.negf %82 : vector<2x128xf32>
    %84 = math.exp %83 : vector<2x128xf32>
    %cst_31 = arith.constant 1.000000e+00 : f32
    %85 = vector.broadcast %cst_31 : f32 to vector<2x128xf32>
    %86 = arith.addf %85, %84 : vector<2x128xf32>
    %87 = arith.divf %85, %86 : vector<2x128xf32>
    %88 = math.tanh %82 : vector<2x128xf32>
    %89 = vector.extract_strided_slice %87 {offsets = [0, 0], sizes = [2, 32], strides = [1, 1]} : vector<2x128xf32> to vector<2x32xf32>
    %90 = vector.extract_strided_slice %87 {offsets = [0, 32], sizes = [2, 32], strides = [1, 1]} : vector<2x128xf32> to vector<2x32xf32>
    %91 = vector.extract_strided_slice %88 {offsets = [0, 64], sizes = [2, 32], strides = [1, 1]} : vector<2x128xf32> to vector<2x32xf32>
    %92 = vector.extract_strided_slice %87 {offsets = [0, 96], sizes = [2, 32], strides = [1, 1]} : vector<2x128xf32> to vector<2x32xf32>
    %93 = arith.mulf %90, %72 : vector<2x32xf32>
    %94 = arith.mulf %89, %91 : vector<2x32xf32>
    %95 = arith.addf %93, %94 : vector<2x32xf32>
    %96 = math.tanh %95 : vector<2x32xf32>
    %97 = arith.mulf %92, %96 : vector<2x32xf32>
    %c2_i32_32 = arith.constant 2 : i32
    %98 = arith.muli %c3_i32, %c2_i32_32 : i32
    %99 = arith.index_cast %98 : i32 to index
    %c0_33 = arith.constant 0 : index
    %100 = vector.load %arg8[%99, %c0_33] : memref<16x32xf32, #tpu.memory_space<vmem>>, vector<2x32xf32>
    tpu.vector_store %arg8[%99, %c0_33], %97 {strides = array<i32>} : memref<16x32xf32, #tpu.memory_space<vmem>>, vector<2x32xf32>,
    %c4_i32 = arith.constant 4 : i32
    %c2_i32_34 = arith.constant 2 : i32
    %101 = arith.muli %c4_i32, %c2_i32_34 : i32
    %102 = arith.index_cast %101 : i32 to index
    %c0_35 = arith.constant 0 : index
    %103 = vector.load %arg9[%102, %c0_35] : memref<16x128xf32, #tpu.memory_space<vmem>>, vector<2x128xf32>
    %cst_36 = arith.constant dense<0.000000e+00> : vector<2x128xf32>
    %104 = tpu.matmul %97, %1, %cst_36 {dimension_numbers = #tpu.dot_dimension_numbers<[1], [0], [0], [1], [0, 0, 1, 1], [], []>} : vector<2x32xf32>, vector<32x128xf32>, vector<2x128xf32> -> vector<2x128xf32>
    %105 = arith.addf %103, %104 : vector<2x128xf32>
    %106 = arith.negf %105 : vector<2x128xf32>
    %107 = math.exp %106 : vector<2x128xf32>
    %cst_37 = arith.constant 1.000000e+00 : f32
    %108 = vector.broadcast %cst_37 : f32 to vector<2x128xf32>
    %109 = arith.addf %108, %107 : vector<2x128xf32>
    %110 = arith.divf %108, %109 : vector<2x128xf32>
    %111 = math.tanh %105 : vector<2x128xf32>
    %112 = vector.extract_strided_slice %110 {offsets = [0, 0], sizes = [2, 32], strides = [1, 1]} : vector<2x128xf32> to vector<2x32xf32>
    %113 = vector.extract_strided_slice %110 {offsets = [0, 32], sizes = [2, 32], strides = [1, 1]} : vector<2x128xf32> to vector<2x32xf32>
    %114 = vector.extract_strided_slice %111 {offsets = [0, 64], sizes = [2, 32], strides = [1, 1]} : vector<2x128xf32> to vector<2x32xf32>
    %115 = vector.extract_strided_slice %110 {offsets = [0, 96], sizes = [2, 32], strides = [1, 1]} : vector<2x128xf32> to vector<2x32xf32>
    %116 = arith.mulf %113, %95 : vector<2x32xf32>
    %117 = arith.mulf %112, %114 : vector<2x32xf32>
    %118 = arith.addf %116, %117 : vector<2x32xf32>
    %119 = math.tanh %118 : vector<2x32xf32>
    %120 = arith.mulf %115, %119 : vector<2x32xf32>
    %c2_i32_38 = arith.constant 2 : i32
    %121 = arith.muli %c4_i32, %c2_i32_38 : i32
    %122 = arith.index_cast %121 : i32 to index
    %c0_39 = arith.constant 0 : index
    %123 = vector.load %arg8[%122, %c0_39] : memref<16x32xf32, #tpu.memory_space<vmem>>, vector<2x32xf32>
    tpu.vector_store %arg8[%122, %c0_39], %120 {strides = array<i32>} : memref<16x32xf32, #tpu.memory_space<vmem>>, vector<2x32xf32>,
    %c5_i32 = arith.constant 5 : i32
    %c2_i32_40 = arith.constant 2 : i32
    %124 = arith.muli %c5_i32, %c2_i32_40 : i32
    %125 = arith.index_cast %124 : i32 to index
    %c0_41 = arith.constant 0 : index
    %126 = vector.load %arg9[%125, %c0_41] : memref<16x128xf32, #tpu.memory_space<vmem>>, vector<2x128xf32>
    %cst_42 = arith.constant dense<0.000000e+00> : vector<2x128xf32>
    %127 = tpu.matmul %120, %1, %cst_42 {dimension_numbers = #tpu.dot_dimension_numbers<[1], [0], [0], [1], [0, 0, 1, 1], [], []>} : vector<2x32xf32>, vector<32x128xf32>, vector<2x128xf32> -> vector<2x128xf32>
    %128 = arith.addf %126, %127 : vector<2x128xf32>
    %129 = arith.negf %128 : vector<2x128xf32>
    %130 = math.exp %129 : vector<2x128xf32>
    %cst_43 = arith.constant 1.000000e+00 : f32
    %131 = vector.broadcast %cst_43 : f32 to vector<2x128xf32>
    %132 = arith.addf %131, %130 : vector<2x128xf32>
    %133 = arith.divf %131, %132 : vector<2x128xf32>
    %134 = math.tanh %128 : vector<2x128xf32>
    %135 = vector.extract_strided_slice %133 {offsets = [0, 0], sizes = [2, 32], strides = [1, 1]} : vector<2x128xf32> to vector<2x32xf32>
    %136 = vector.extract_strided_slice %133 {offsets = [0, 32], sizes = [2, 32], strides = [1, 1]} : vector<2x128xf32> to vector<2x32xf32>
    %137 = vector.extract_strided_slice %134 {offsets = [0, 64], sizes = [2, 32], strides = [1, 1]} : vector<2x128xf32> to vector<2x32xf32>
    %138 = vector.extract_strided_slice %133 {offsets = [0, 96], sizes = [2, 32], strides = [1, 1]} : vector<2x128xf32> to vector<2x32xf32>
    %139 = arith.mulf %136, %118 : vector<2x32xf32>
    %140 = arith.mulf %135, %137 : vector<2x32xf32>
    %141 = arith.addf %139, %140 : vector<2x32xf32>
    %142 = math.tanh %141 : vector<2x32xf32>
    %143 = arith.mulf %138, %142 : vector<2x32xf32>
    %c2_i32_44 = arith.constant 2 : i32
    %144 = arith.muli %c5_i32, %c2_i32_44 : i32
    %145 = arith.index_cast %144 : i32 to index
    %c0_45 = arith.constant 0 : index
    %146 = vector.load %arg8[%145, %c0_45] : memref<16x32xf32, #tpu.memory_space<vmem>>, vector<2x32xf32>
    tpu.vector_store %arg8[%145, %c0_45], %143 {strides = array<i32>} : memref<16x32xf32, #tpu.memory_space<vmem>>, vector<2x32xf32>,
    %c6_i32 = arith.constant 6 : i32
    %c2_i32_46 = arith.constant 2 : i32
    %147 = arith.muli %c6_i32, %c2_i32_46 : i32
    %148 = arith.index_cast %147 : i32 to index
    %c0_47 = arith.constant 0 : index
    %149 = vector.load %arg9[%148, %c0_47] : memref<16x128xf32, #tpu.memory_space<vmem>>, vector<2x128xf32>
    %cst_48 = arith.constant dense<0.000000e+00> : vector<2x128xf32>
    %150 = tpu.matmul %143, %1, %cst_48 {dimension_numbers = #tpu.dot_dimension_numbers<[1], [0], [0], [1], [0, 0, 1, 1], [], []>} : vector<2x32xf32>, vector<32x128xf32>, vector<2x128xf32> -> vector<2x128xf32>
    %151 = arith.addf %149, %150 : vector<2x128xf32>
    %152 = arith.negf %151 : vector<2x128xf32>
    %153 = math.exp %152 : vector<2x128xf32>
    %cst_49 = arith.constant 1.000000e+00 : f32
    %154 = vector.broadcast %cst_49 : f32 to vector<2x128xf32>
    %155 = arith.addf %154, %153 : vector<2x128xf32>
    %156 = arith.divf %154, %155 : vector<2x128xf32>
    %157 = math.tanh %151 : vector<2x128xf32>
    %158 = vector.extract_strided_slice %156 {offsets = [0, 0], sizes = [2, 32], strides = [1, 1]} : vector<2x128xf32> to vector<2x32xf32>
    %159 = vector.extract_strided_slice %156 {offsets = [0, 32], sizes = [2, 32], strides = [1, 1]} : vector<2x128xf32> to vector<2x32xf32>
    %160 = vector.extract_strided_slice %157 {offsets = [0, 64], sizes = [2, 32], strides = [1, 1]} : vector<2x128xf32> to vector<2x32xf32>
    %161 = vector.extract_strided_slice %156 {offsets = [0, 96], sizes = [2, 32], strides = [1, 1]} : vector<2x128xf32> to vector<2x32xf32>
    %162 = arith.mulf %159, %141 : vector<2x32xf32>
    %163 = arith.mulf %158, %160 : vector<2x32xf32>
    %164 = arith.addf %162, %163 : vector<2x32xf32>
    %165 = math.tanh %164 : vector<2x32xf32>
    %166 = arith.mulf %161, %165 : vector<2x32xf32>
    %c2_i32_50 = arith.constant 2 : i32
    %167 = arith.muli %c6_i32, %c2_i32_50 : i32
    %168 = arith.index_cast %167 : i32 to index
    %c0_51 = arith.constant 0 : index
    %169 = vector.load %arg8[%168, %c0_51] : memref<16x32xf32, #tpu.memory_space<vmem>>, vector<2x32xf32>
    tpu.vector_store %arg8[%168, %c0_51], %166 {strides = array<i32>} : memref<16x32xf32, #tpu.memory_space<vmem>>, vector<2x32xf32>,
    %c7_i32 = arith.constant 7 : i32
    %c2_i32_52 = arith.constant 2 : i32
    %170 = arith.muli %c7_i32, %c2_i32_52 : i32
    %171 = arith.index_cast %170 : i32 to index
    %c0_53 = arith.constant 0 : index
    %172 = vector.load %arg9[%171, %c0_53] : memref<16x128xf32, #tpu.memory_space<vmem>>, vector<2x128xf32>
    %cst_54 = arith.constant dense<0.000000e+00> : vector<2x128xf32>
    %173 = tpu.matmul %166, %1, %cst_54 {dimension_numbers = #tpu.dot_dimension_numbers<[1], [0], [0], [1], [0, 0, 1, 1], [], []>} : vector<2x32xf32>, vector<32x128xf32>, vector<2x128xf32> -> vector<2x128xf32>
    %174 = arith.addf %172, %173 : vector<2x128xf32>
    %175 = arith.negf %174 : vector<2x128xf32>
    %176 = math.exp %175 : vector<2x128xf32>
    %cst_55 = arith.constant 1.000000e+00 : f32
    %177 = vector.broadcast %cst_55 : f32 to vector<2x128xf32>
    %178 = arith.addf %177, %176 : vector<2x128xf32>
    %179 = arith.divf %177, %178 : vector<2x128xf32>
    %180 = math.tanh %174 : vector<2x128xf32>
    %181 = vector.extract_strided_slice %179 {offsets = [0, 0], sizes = [2, 32], strides = [1, 1]} : vector<2x128xf32> to vector<2x32xf32>
    %182 = vector.extract_strided_slice %179 {offsets = [0, 32], sizes = [2, 32], strides = [1, 1]} : vector<2x128xf32> to vector<2x32xf32>
    %183 = vector.extract_strided_slice %180 {offsets = [0, 64], sizes = [2, 32], strides = [1, 1]} : vector<2x128xf32> to vector<2x32xf32>
    %184 = vector.extract_strided_slice %179 {offsets = [0, 96], sizes = [2, 32], strides = [1, 1]} : vector<2x128xf32> to vector<2x32xf32>
    %185 = arith.mulf %182, %164 : vector<2x32xf32>
    %186 = arith.mulf %181, %183 : vector<2x32xf32>
    %187 = arith.addf %185, %186 : vector<2x32xf32>
    %188 = math.tanh %187 : vector<2x32xf32>
    %189 = arith.mulf %184, %188 : vector<2x32xf32>
    %c2_i32_56 = arith.constant 2 : i32
    %190 = arith.muli %c7_i32, %c2_i32_56 : i32
    %191 = arith.index_cast %190 : i32 to index
    %c0_57 = arith.constant 0 : index
    %192 = vector.load %arg8[%191, %c0_57] : memref<16x32xf32, #tpu.memory_space<vmem>>, vector<2x32xf32>
    tpu.vector_store %arg8[%191, %c0_57], %189 {strides = array<i32>} : memref<16x32xf32, #tpu.memory_space<vmem>>, vector<2x32xf32>,
    %c8_i32 = arith.constant 8 : i32
    %c0_58 = arith.constant 0 : index
    %c0_59 = arith.constant 0 : index
    %193 = vector.load %arg5[%c0_58, %c0_59] : memref<32x128xf32, #tpu.memory_space<vmem>>, vector<32x128xf32>
    %c0_60 = arith.constant 0 : index
    %c0_61 = arith.constant 0 : index
    %194 = vector.load %arg6[%c0_60, %c0_61] : memref<32x128xf32, #tpu.memory_space<vmem>>, vector<32x128xf32>
    %c0_62 = arith.constant 0 : index
    %c0_63 = arith.constant 0 : index
    %195 = vector.load %arg7[%c0_62, %c0_63] : memref<1x128xf32, #tpu.memory_space<vmem>>, vector<1x128xf32>
    %c0_64 = arith.constant 0 : index
    %c0_65 = arith.constant 0 : index
    %196 = vector.load %arg8[%c0_64, %c0_65] : memref<16x32xf32, #tpu.memory_space<vmem>>, vector<16x32xf32>
    %cst_66 = arith.constant dense<0.000000e+00> : vector<16x128xf32>
    %197 = tpu.matmul %196, %193, %cst_66 {dimension_numbers = #tpu.dot_dimension_numbers<[1], [0], [0], [1], [0, 0, 1, 1], [], []>} : vector<16x32xf32>, vector<32x128xf32>, vector<16x128xf32> -> vector<16x128xf32>
    %198 = vector.broadcast %195 : vector<1x128xf32> to vector<16x128xf32>
    %199 = arith.addf %197, %198 : vector<16x128xf32>
    %c0_67 = arith.constant 0 : index
    %c0_68 = arith.constant 0 : index
    %200 = vector.load %arg9[%c0_67, %c0_68] : memref<16x128xf32, #tpu.memory_space<vmem>>, vector<16x128xf32>
    tpu.vector_store %arg9[%c0_67, %c0_68], %199 {strides = array<i32>} : memref<16x128xf32, #tpu.memory_space<vmem>>, vector<16x128xf32>,
    %cst_69 = arith.constant 0.000000e+00 : f32
    %201 = vector.broadcast %cst_69 : f32 to vector<2x32xf32>
    %c0_i32_70 = arith.constant 0 : i32
    %c2_i32_71 = arith.constant 2 : i32
    %202 = arith.muli %c0_i32_70, %c2_i32_71 : i32
    %203 = arith.index_cast %202 : i32 to index
    %c0_72 = arith.constant 0 : index
    %204 = vector.load %arg9[%203, %c0_72] : memref<16x128xf32, #tpu.memory_space<vmem>>, vector<2x128xf32>
    %cst_73 = arith.constant dense<0.000000e+00> : vector<2x128xf32>
    %205 = tpu.matmul %201, %194, %cst_73 {dimension_numbers = #tpu.dot_dimension_numbers<[1], [0], [0], [1], [0, 0, 1, 1], [], []>} : vector<2x32xf32>, vector<32x128xf32>, vector<2x128xf32> -> vector<2x128xf32>
    %206 = arith.addf %204, %205 : vector<2x128xf32>
    %207 = arith.negf %206 : vector<2x128xf32>
    %208 = math.exp %207 : vector<2x128xf32>
    %cst_74 = arith.constant 1.000000e+00 : f32
    %209 = vector.broadcast %cst_74 : f32 to vector<2x128xf32>
    %210 = arith.addf %209, %208 : vector<2x128xf32>
    %211 = arith.divf %209, %210 : vector<2x128xf32>
    %212 = math.tanh %206 : vector<2x128xf32>
    %213 = vector.extract_strided_slice %211 {offsets = [0, 0], sizes = [2, 32], strides = [1, 1]} : vector<2x128xf32> to vector<2x32xf32>
    %214 = vector.extract_strided_slice %211 {offsets = [0, 32], sizes = [2, 32], strides = [1, 1]} : vector<2x128xf32> to vector<2x32xf32>
    %215 = vector.extract_strided_slice %212 {offsets = [0, 64], sizes = [2, 32], strides = [1, 1]} : vector<2x128xf32> to vector<2x32xf32>
    %216 = vector.extract_strided_slice %211 {offsets = [0, 96], sizes = [2, 32], strides = [1, 1]} : vector<2x128xf32> to vector<2x32xf32>
    %217 = arith.mulf %214, %201 : vector<2x32xf32>
    %218 = arith.mulf %213, %215 : vector<2x32xf32>
    %219 = arith.addf %217, %218 : vector<2x32xf32>
    %220 = math.tanh %219 : vector<2x32xf32>
    %221 = arith.mulf %216, %220 : vector<2x32xf32>
    %c2_i32_75 = arith.constant 2 : i32
    %222 = arith.muli %c0_i32_70, %c2_i32_75 : i32
    %223 = arith.index_cast %222 : i32 to index
    %c0_76 = arith.constant 0 : index
    %224 = vector.load %arg8[%223, %c0_76] : memref<16x32xf32, #tpu.memory_space<vmem>>, vector<2x32xf32>
    tpu.vector_store %arg8[%223, %c0_76], %221 {strides = array<i32>} : memref<16x32xf32, #tpu.memory_space<vmem>>, vector<2x32xf32>,
    %c1_i32_77 = arith.constant 1 : i32
    %c2_i32_78 = arith.constant 2 : i32
    %225 = arith.muli %c1_i32_77, %c2_i32_78 : i32
    %226 = arith.index_cast %225 : i32 to index
    %c0_79 = arith.constant 0 : index
    %227 = vector.load %arg9[%226, %c0_79] : memref<16x128xf32, #tpu.memory_space<vmem>>, vector<2x128xf32>
    %cst_80 = arith.constant dense<0.000000e+00> : vector<2x128xf32>
    %228 = tpu.matmul %221, %194, %cst_80 {dimension_numbers = #tpu.dot_dimension_numbers<[1], [0], [0], [1], [0, 0, 1, 1], [], []>} : vector<2x32xf32>, vector<32x128xf32>, vector<2x128xf32> -> vector<2x128xf32>
    %229 = arith.addf %227, %228 : vector<2x128xf32>
    %230 = arith.negf %229 : vector<2x128xf32>
    %231 = math.exp %230 : vector<2x128xf32>
    %cst_81 = arith.constant 1.000000e+00 : f32
    %232 = vector.broadcast %cst_81 : f32 to vector<2x128xf32>
    %233 = arith.addf %232, %231 : vector<2x128xf32>
    %234 = arith.divf %232, %233 : vector<2x128xf32>
    %235 = math.tanh %229 : vector<2x128xf32>
    %236 = vector.extract_strided_slice %234 {offsets = [0, 0], sizes = [2, 32], strides = [1, 1]} : vector<2x128xf32> to vector<2x32xf32>
    %237 = vector.extract_strided_slice %234 {offsets = [0, 32], sizes = [2, 32], strides = [1, 1]} : vector<2x128xf32> to vector<2x32xf32>
    %238 = vector.extract_strided_slice %235 {offsets = [0, 64], sizes = [2, 32], strides = [1, 1]} : vector<2x128xf32> to vector<2x32xf32>
    %239 = vector.extract_strided_slice %234 {offsets = [0, 96], sizes = [2, 32], strides = [1, 1]} : vector<2x128xf32> to vector<2x32xf32>
    %240 = arith.mulf %237, %219 : vector<2x32xf32>
    %241 = arith.mulf %236, %238 : vector<2x32xf32>
    %242 = arith.addf %240, %241 : vector<2x32xf32>
    %243 = math.tanh %242 : vector<2x32xf32>
    %244 = arith.mulf %239, %243 : vector<2x32xf32>
    %c2_i32_82 = arith.constant 2 : i32
    %245 = arith.muli %c1_i32_77, %c2_i32_82 : i32
    %246 = arith.index_cast %245 : i32 to index
    %c0_83 = arith.constant 0 : index
    %247 = vector.load %arg8[%246, %c0_83] : memref<16x32xf32, #tpu.memory_space<vmem>>, vector<2x32xf32>
    tpu.vector_store %arg8[%246, %c0_83], %244 {strides = array<i32>} : memref<16x32xf32, #tpu.memory_space<vmem>>, vector<2x32xf32>,
    %c2_i32_84 = arith.constant 2 : i32
    %c2_i32_85 = arith.constant 2 : i32
    %248 = arith.muli %c2_i32_84, %c2_i32_85 : i32
    %249 = arith.index_cast %248 : i32 to index
    %c0_86 = arith.constant 0 : index
    %250 = vector.load %arg9[%249, %c0_86] : memref<16x128xf32, #tpu.memory_space<vmem>>, vector<2x128xf32>
    %cst_87 = arith.constant dense<0.000000e+00> : vector<2x128xf32>
    %251 = tpu.matmul %244, %194, %cst_87 {dimension_numbers = #tpu.dot_dimension_numbers<[1], [0], [0], [1], [0, 0, 1, 1], [], []>} : vector<2x32xf32>, vector<32x128xf32>, vector<2x128xf32> -> vector<2x128xf32>
    %252 = arith.addf %250, %251 : vector<2x128xf32>
    %253 = arith.negf %252 : vector<2x128xf32>
    %254 = math.exp %253 : vector<2x128xf32>
    %cst_88 = arith.constant 1.000000e+00 : f32
    %255 = vector.broadcast %cst_88 : f32 to vector<2x128xf32>
    %256 = arith.addf %255, %254 : vector<2x128xf32>
    %257 = arith.divf %255, %256 : vector<2x128xf32>
    %258 = math.tanh %252 : vector<2x128xf32>
    %259 = vector.extract_strided_slice %257 {offsets = [0, 0], sizes = [2, 32], strides = [1, 1]} : vector<2x128xf32> to vector<2x32xf32>
    %260 = vector.extract_strided_slice %257 {offsets = [0, 32], sizes = [2, 32], strides = [1, 1]} : vector<2x128xf32> to vector<2x32xf32>
    %261 = vector.extract_strided_slice %258 {offsets = [0, 64], sizes = [2, 32], strides = [1, 1]} : vector<2x128xf32> to vector<2x32xf32>
    %262 = vector.extract_strided_slice %257 {offsets = [0, 96], sizes = [2, 32], strides = [1, 1]} : vector<2x128xf32> to vector<2x32xf32>
    %263 = arith.mulf %260, %242 : vector<2x32xf32>
    %264 = arith.mulf %259, %261 : vector<2x32xf32>
    %265 = arith.addf %263, %264 : vector<2x32xf32>
    %266 = math.tanh %265 : vector<2x32xf32>
    %267 = arith.mulf %262, %266 : vector<2x32xf32>
    %c2_i32_89 = arith.constant 2 : i32
    %268 = arith.muli %c2_i32_84, %c2_i32_89 : i32
    %269 = arith.index_cast %268 : i32 to index
    %c0_90 = arith.constant 0 : index
    %270 = vector.load %arg8[%269, %c0_90] : memref<16x32xf32, #tpu.memory_space<vmem>>, vector<2x32xf32>
    tpu.vector_store %arg8[%269, %c0_90], %267 {strides = array<i32>} : memref<16x32xf32, #tpu.memory_space<vmem>>, vector<2x32xf32>,
    %c3_i32_91 = arith.constant 3 : i32
    %c2_i32_92 = arith.constant 2 : i32
    %271 = arith.muli %c3_i32_91, %c2_i32_92 : i32
    %272 = arith.index_cast %271 : i32 to index
    %c0_93 = arith.constant 0 : index
    %273 = vector.load %arg9[%272, %c0_93] : memref<16x128xf32, #tpu.memory_space<vmem>>, vector<2x128xf32>
    %cst_94 = arith.constant dense<0.000000e+00> : vector<2x128xf32>
    %274 = tpu.matmul %267, %194, %cst_94 {dimension_numbers = #tpu.dot_dimension_numbers<[1], [0], [0], [1], [0, 0, 1, 1], [], []>} : vector<2x32xf32>, vector<32x128xf32>, vector<2x128xf32> -> vector<2x128xf32>
    %275 = arith.addf %273, %274 : vector<2x128xf32>
    %276 = arith.negf %275 : vector<2x128xf32>
    %277 = math.exp %276 : vector<2x128xf32>
    %cst_95 = arith.constant 1.000000e+00 : f32
    %278 = vector.broadcast %cst_95 : f32 to vector<2x128xf32>
    %279 = arith.addf %278, %277 : vector<2x128xf32>
    %280 = arith.divf %278, %279 : vector<2x128xf32>
    %281 = math.tanh %275 : vector<2x128xf32>
    %282 = vector.extract_strided_slice %280 {offsets = [0, 0], sizes = [2, 32], strides = [1, 1]} : vector<2x128xf32> to vector<2x32xf32>
    %283 = vector.extract_strided_slice %280 {offsets = [0, 32], sizes = [2, 32], strides = [1, 1]} : vector<2x128xf32> to vector<2x32xf32>
    %284 = vector.extract_strided_slice %281 {offsets = [0, 64], sizes = [2, 32], strides = [1, 1]} : vector<2x128xf32> to vector<2x32xf32>
    %285 = vector.extract_strided_slice %280 {offsets = [0, 96], sizes = [2, 32], strides = [1, 1]} : vector<2x128xf32> to vector<2x32xf32>
    %286 = arith.mulf %283, %265 : vector<2x32xf32>
    %287 = arith.mulf %282, %284 : vector<2x32xf32>
    %288 = arith.addf %286, %287 : vector<2x32xf32>
    %289 = math.tanh %288 : vector<2x32xf32>
    %290 = arith.mulf %285, %289 : vector<2x32xf32>
    %c2_i32_96 = arith.constant 2 : i32
    %291 = arith.muli %c3_i32_91, %c2_i32_96 : i32
    %292 = arith.index_cast %291 : i32 to index
    %c0_97 = arith.constant 0 : index
    %293 = vector.load %arg8[%292, %c0_97] : memref<16x32xf32, #tpu.memory_space<vmem>>, vector<2x32xf32>
    tpu.vector_store %arg8[%292, %c0_97], %290 {strides = array<i32>} : memref<16x32xf32, #tpu.memory_space<vmem>>, vector<2x32xf32>,
    %c4_i32_98 = arith.constant 4 : i32
    %c2_i32_99 = arith.constant 2 : i32
    %294 = arith.muli %c4_i32_98, %c2_i32_99 : i32
    %295 = arith.index_cast %294 : i32 to index
    %c0_100 = arith.constant 0 : index
    %296 = vector.load %arg9[%295, %c0_100] : memref<16x128xf32, #tpu.memory_space<vmem>>, vector<2x128xf32>
    %cst_101 = arith.constant dense<0.000000e+00> : vector<2x128xf32>
    %297 = tpu.matmul %290, %194, %cst_101 {dimension_numbers = #tpu.dot_dimension_numbers<[1], [0], [0], [1], [0, 0, 1, 1], [], []>} : vector<2x32xf32>, vector<32x128xf32>, vector<2x128xf32> -> vector<2x128xf32>
    %298 = arith.addf %296, %297 : vector<2x128xf32>
    %299 = arith.negf %298 : vector<2x128xf32>
    %300 = math.exp %299 : vector<2x128xf32>
    %cst_102 = arith.constant 1.000000e+00 : f32
    %301 = vector.broadcast %cst_102 : f32 to vector<2x128xf32>
    %302 = arith.addf %301, %300 : vector<2x128xf32>
    %303 = arith.divf %301, %302 : vector<2x128xf32>
    %304 = math.tanh %298 : vector<2x128xf32>
    %305 = vector.extract_strided_slice %303 {offsets = [0, 0], sizes = [2, 32], strides = [1, 1]} : vector<2x128xf32> to vector<2x32xf32>
    %306 = vector.extract_strided_slice %303 {offsets = [0, 32], sizes = [2, 32], strides = [1, 1]} : vector<2x128xf32> to vector<2x32xf32>
    %307 = vector.extract_strided_slice %304 {offsets = [0, 64], sizes = [2, 32], strides = [1, 1]} : vector<2x128xf32> to vector<2x32xf32>
    %308 = vector.extract_strided_slice %303 {offsets = [0, 96], sizes = [2, 32], strides = [1, 1]} : vector<2x128xf32> to vector<2x32xf32>
    %309 = arith.mulf %306, %288 : vector<2x32xf32>
    %310 = arith.mulf %305, %307 : vector<2x32xf32>
    %311 = arith.addf %309, %310 : vector<2x32xf32>
    %312 = math.tanh %311 : vector<2x32xf32>
    %313 = arith.mulf %308, %312 : vector<2x32xf32>
    %c2_i32_103 = arith.constant 2 : i32
    %314 = arith.muli %c4_i32_98, %c2_i32_103 : i32
    %315 = arith.index_cast %314 : i32 to index
    %c0_104 = arith.constant 0 : index
    %316 = vector.load %arg8[%315, %c0_104] : memref<16x32xf32, #tpu.memory_space<vmem>>, vector<2x32xf32>
    tpu.vector_store %arg8[%315, %c0_104], %313 {strides = array<i32>} : memref<16x32xf32, #tpu.memory_space<vmem>>, vector<2x32xf32>,
    %c5_i32_105 = arith.constant 5 : i32
    %c2_i32_106 = arith.constant 2 : i32
    %317 = arith.muli %c5_i32_105, %c2_i32_106 : i32
    %318 = arith.index_cast %317 : i32 to index
    %c0_107 = arith.constant 0 : index
    %319 = vector.load %arg9[%318, %c0_107] : memref<16x128xf32, #tpu.memory_space<vmem>>, vector<2x128xf32>
    %cst_108 = arith.constant dense<0.000000e+00> : vector<2x128xf32>
    %320 = tpu.matmul %313, %194, %cst_108 {dimension_numbers = #tpu.dot_dimension_numbers<[1], [0], [0], [1], [0, 0, 1, 1], [], []>} : vector<2x32xf32>, vector<32x128xf32>, vector<2x128xf32> -> vector<2x128xf32>
    %321 = arith.addf %319, %320 : vector<2x128xf32>
    %322 = arith.negf %321 : vector<2x128xf32>
    %323 = math.exp %322 : vector<2x128xf32>
    %cst_109 = arith.constant 1.000000e+00 : f32
    %324 = vector.broadcast %cst_109 : f32 to vector<2x128xf32>
    %325 = arith.addf %324, %323 : vector<2x128xf32>
    %326 = arith.divf %324, %325 : vector<2x128xf32>
    %327 = math.tanh %321 : vector<2x128xf32>
    %328 = vector.extract_strided_slice %326 {offsets = [0, 0], sizes = [2, 32], strides = [1, 1]} : vector<2x128xf32> to vector<2x32xf32>
    %329 = vector.extract_strided_slice %326 {offsets = [0, 32], sizes = [2, 32], strides = [1, 1]} : vector<2x128xf32> to vector<2x32xf32>
    %330 = vector.extract_strided_slice %327 {offsets = [0, 64], sizes = [2, 32], strides = [1, 1]} : vector<2x128xf32> to vector<2x32xf32>
    %331 = vector.extract_strided_slice %326 {offsets = [0, 96], sizes = [2, 32], strides = [1, 1]} : vector<2x128xf32> to vector<2x32xf32>
    %332 = arith.mulf %329, %311 : vector<2x32xf32>
    %333 = arith.mulf %328, %330 : vector<2x32xf32>
    %334 = arith.addf %332, %333 : vector<2x32xf32>
    %335 = math.tanh %334 : vector<2x32xf32>
    %336 = arith.mulf %331, %335 : vector<2x32xf32>
    %c2_i32_110 = arith.constant 2 : i32
    %337 = arith.muli %c5_i32_105, %c2_i32_110 : i32
    %338 = arith.index_cast %337 : i32 to index
    %c0_111 = arith.constant 0 : index
    %339 = vector.load %arg8[%338, %c0_111] : memref<16x32xf32, #tpu.memory_space<vmem>>, vector<2x32xf32>
    tpu.vector_store %arg8[%338, %c0_111], %336 {strides = array<i32>} : memref<16x32xf32, #tpu.memory_space<vmem>>, vector<2x32xf32>,
    %c6_i32_112 = arith.constant 6 : i32
    %c2_i32_113 = arith.constant 2 : i32
    %340 = arith.muli %c6_i32_112, %c2_i32_113 : i32
    %341 = arith.index_cast %340 : i32 to index
    %c0_114 = arith.constant 0 : index
    %342 = vector.load %arg9[%341, %c0_114] : memref<16x128xf32, #tpu.memory_space<vmem>>, vector<2x128xf32>
    %cst_115 = arith.constant dense<0.000000e+00> : vector<2x128xf32>
    %343 = tpu.matmul %336, %194, %cst_115 {dimension_numbers = #tpu.dot_dimension_numbers<[1], [0], [0], [1], [0, 0, 1, 1], [], []>} : vector<2x32xf32>, vector<32x128xf32>, vector<2x128xf32> -> vector<2x128xf32>
    %344 = arith.addf %342, %343 : vector<2x128xf32>
    %345 = arith.negf %344 : vector<2x128xf32>
    %346 = math.exp %345 : vector<2x128xf32>
    %cst_116 = arith.constant 1.000000e+00 : f32
    %347 = vector.broadcast %cst_116 : f32 to vector<2x128xf32>
    %348 = arith.addf %347, %346 : vector<2x128xf32>
    %349 = arith.divf %347, %348 : vector<2x128xf32>
    %350 = math.tanh %344 : vector<2x128xf32>
    %351 = vector.extract_strided_slice %349 {offsets = [0, 0], sizes = [2, 32], strides = [1, 1]} : vector<2x128xf32> to vector<2x32xf32>
    %352 = vector.extract_strided_slice %349 {offsets = [0, 32], sizes = [2, 32], strides = [1, 1]} : vector<2x128xf32> to vector<2x32xf32>
    %353 = vector.extract_strided_slice %350 {offsets = [0, 64], sizes = [2, 32], strides = [1, 1]} : vector<2x128xf32> to vector<2x32xf32>
    %354 = vector.extract_strided_slice %349 {offsets = [0, 96], sizes = [2, 32], strides = [1, 1]} : vector<2x128xf32> to vector<2x32xf32>
    %355 = arith.mulf %352, %334 : vector<2x32xf32>
    %356 = arith.mulf %351, %353 : vector<2x32xf32>
    %357 = arith.addf %355, %356 : vector<2x32xf32>
    %358 = math.tanh %357 : vector<2x32xf32>
    %359 = arith.mulf %354, %358 : vector<2x32xf32>
    %c2_i32_117 = arith.constant 2 : i32
    %360 = arith.muli %c6_i32_112, %c2_i32_117 : i32
    %361 = arith.index_cast %360 : i32 to index
    %c0_118 = arith.constant 0 : index
    %362 = vector.load %arg8[%361, %c0_118] : memref<16x32xf32, #tpu.memory_space<vmem>>, vector<2x32xf32>
    tpu.vector_store %arg8[%361, %c0_118], %359 {strides = array<i32>} : memref<16x32xf32, #tpu.memory_space<vmem>>, vector<2x32xf32>,
    %c7_i32_119 = arith.constant 7 : i32
    %c2_i32_120 = arith.constant 2 : i32
    %363 = arith.muli %c7_i32_119, %c2_i32_120 : i32
    %364 = arith.index_cast %363 : i32 to index
    %c0_121 = arith.constant 0 : index
    %365 = vector.load %arg9[%364, %c0_121] : memref<16x128xf32, #tpu.memory_space<vmem>>, vector<2x128xf32>
    %cst_122 = arith.constant dense<0.000000e+00> : vector<2x128xf32>
    %366 = tpu.matmul %359, %194, %cst_122 {dimension_numbers = #tpu.dot_dimension_numbers<[1], [0], [0], [1], [0, 0, 1, 1], [], []>} : vector<2x32xf32>, vector<32x128xf32>, vector<2x128xf32> -> vector<2x128xf32>
    %367 = arith.addf %365, %366 : vector<2x128xf32>
    %368 = arith.negf %367 : vector<2x128xf32>
    %369 = math.exp %368 : vector<2x128xf32>
    %cst_123 = arith.constant 1.000000e+00 : f32
    %370 = vector.broadcast %cst_123 : f32 to vector<2x128xf32>
    %371 = arith.addf %370, %369 : vector<2x128xf32>
    %372 = arith.divf %370, %371 : vector<2x128xf32>
    %373 = math.tanh %367 : vector<2x128xf32>
    %374 = vector.extract_strided_slice %372 {offsets = [0, 0], sizes = [2, 32], strides = [1, 1]} : vector<2x128xf32> to vector<2x32xf32>
    %375 = vector.extract_strided_slice %372 {offsets = [0, 32], sizes = [2, 32], strides = [1, 1]} : vector<2x128xf32> to vector<2x32xf32>
    %376 = vector.extract_strided_slice %373 {offsets = [0, 64], sizes = [2, 32], strides = [1, 1]} : vector<2x128xf32> to vector<2x32xf32>
    %377 = vector.extract_strided_slice %372 {offsets = [0, 96], sizes = [2, 32], strides = [1, 1]} : vector<2x128xf32> to vector<2x32xf32>
    %378 = arith.mulf %375, %357 : vector<2x32xf32>
    %379 = arith.mulf %374, %376 : vector<2x32xf32>
    %380 = arith.addf %378, %379 : vector<2x32xf32>
    %381 = math.tanh %380 : vector<2x32xf32>
    %382 = arith.mulf %377, %381 : vector<2x32xf32>
    %c2_i32_124 = arith.constant 2 : i32
    %383 = arith.muli %c7_i32_119, %c2_i32_124 : i32
    %384 = arith.index_cast %383 : i32 to index
    %c0_125 = arith.constant 0 : index
    %385 = vector.load %arg8[%384, %c0_125] : memref<16x32xf32, #tpu.memory_space<vmem>>, vector<2x32xf32>
    tpu.vector_store %arg8[%384, %c0_125], %382 {strides = array<i32>} : memref<16x32xf32, #tpu.memory_space<vmem>>, vector<2x32xf32>,
    %c8_i32_126 = arith.constant 8 : i32
    return
  }
  func.func @transform_0(%arg0: i32) -> (i32, i32) {
    %c0_i32 = arith.constant 0 : i32
    %c0_i32_0 = arith.constant 0 : i32
    %c0_i32_1 = arith.constant 0 : i32
    return %c0_i32, %c0_i32_0 : i32, i32
  }
  func.func @transform_1(%arg0: i32) -> (i32, i32) {
    %c0_i32 = arith.constant 0 : i32
    %c0_i32_0 = arith.constant 0 : i32
    %c0_i32_1 = arith.constant 0 : i32
    return %c0_i32, %c0_i32_0 : i32, i32
  }
  func.func @transform_2(%arg0: i32) -> (i32, i32) {
    %c0_i32 = arith.constant 0 : i32
    %c0_i32_0 = arith.constant 0 : i32
    %c0_i32_1 = arith.constant 0 : i32
    return %c0_i32, %c0_i32_0 : i32, i32
  }
  func.func @transform_3(%arg0: i32) -> (i32, i32) {
    %c0_i32 = arith.constant 0 : i32
    %c0_i32_0 = arith.constant 0 : i32
    %c0_i32_1 = arith.constant 0 : i32
    return %c0_i32, %c0_i32_0 : i32, i32
  }
  func.func @transform_4(%arg0: i32) -> (i32, i32) {
    %c0_i32 = arith.constant 0 : i32
    %c0_i32_0 = arith.constant 0 : i32
    %c0_i32_1 = arith.constant 0 : i32
    return %c0_i32, %c0_i32_0 : i32, i32
  }
  func.func @transform_5(%arg0: i32) -> (i32, i32) {
    %c0_i32 = arith.constant 0 : i32
    %c0_i32_0 = arith.constant 0 : i32
    %c0_i32_1 = arith.constant 0 : i32
    return %c0_i32, %c0_i32_0 : i32, i32
  }
  func.func @transform_6(%arg0: i32) -> (i32, i32) {
    %c0_i32 = arith.constant 0 : i32
    %c0_i32_0 = arith.constant 0 : i32
    %c0_i32_1 = arith.constant 0 : i32
    return %c0_i32, %c0_i32_0 : i32, i32
  }
  func.func @transform_7(%arg0: i32) -> (i32, i32) {
    %c0_i32 = arith.constant 0 : i32
    %c0_i32_0 = arith.constant 0 : i32
    %c0_i32_1 = arith.constant 0 : i32
    return %c0_i32, %c0_i32_0 : i32, i32
  }
}

</mosaic_0001>

<llo_original>
// kernel: tpu_custom_call.1
$region0: #{tpu_custom_call.1}
  #allocation0 [shape = 'u32[]', space=smem, size = 0x4, offset = 0x4, fixed_abs, tag = 'smem constant byte address 0x4 - core index']
  #allocation1 [shape = 'u32[144,128]{1,0:T(1,128)}', space=vmem, size = 0x12000, scoped, tag = 'internal scratch']
  #allocation2 [shape = 'f32[16,128]{1,0:T(8,128)}', space=vmem, size = 0x2000, scoped, tag = 'scratch operand']
  %s0 = inlined_call_operand.hbm [shape: f32[16,32], index: 0, kind: input, shape index: {}]
  %s1 = inlined_call_operand.hbm [shape: f32[32,128], index: 1, kind: input, shape index: {}]
  %s2 = inlined_call_operand.hbm [shape: f32[32,128], index: 2, kind: input, shape index: {}]
  %s3 = inlined_call_operand.vmem [shape: f32[1,128], index: 3, kind: input, shape index: {}]
  %s4 = inlined_call_operand.hbm [shape: f32[32,128], index: 4, kind: input, shape index: {}]
  %s5 = inlined_call_operand.hbm [shape: f32[32,128], index: 5, kind: input, shape index: {}]
  %s6 = inlined_call_operand.vmem [shape: f32[1,128], index: 6, kind: input, shape index: {}]
  %s7 = inlined_call_operand.hbm [shape: f32[16,32], index: 7, kind: output, shape index: {}]
  %s8 = sld [smem:[#allocation0]]
  $region58: #{tpu_custom_call.1} parent=0
    _
  %s10 = ssub.s32 1, %s8
  %s11 = scalar_select 0, %s10, %s8
  $region1: #{tpu_custom_call.1} parent=0
    #allocation3 [shape = 'u8[8192]{0}', space=vmem, size = 0x2000, scoped, tag = 'input window, operand 0, single buffered']
    #allocation4 [shape = 's32[1]{0}', space=sflag, size = 0x4, scoped, tag = 'scoped memory for tpu_custom_call.1']
    #allocation5 [shape = 's32[1]{0}', space=sflag, size = 0x4, scoped, tag = 'scoped memory for tpu_custom_call.1']
    #allocation6 [shape = 'u8[16384]{0}', space=vmem, size = 0x4000, scoped, tag = 'input window, operand 1, single buffered']
    #allocation7 [shape = 's32[1]{0}', space=sflag, size = 0x4, scoped, tag = 'scoped memory for tpu_custom_call.1']
    #allocation8 [shape = 'u8[16384]{0}', space=vmem, size = 0x4000, scoped, tag = 'input window, operand 2, single buffered']
    #allocation9 [shape = 'u8[16384]{0}', space=vmem, size = 0x4000, scoped, tag = 'input window, operand 4, single buffered']
    #allocation10 [shape = 's32[1]{0}', space=sflag, size = 0x4, scoped, tag = 'scoped memory for tpu_custom_call.1']
    #allocation11 [shape = 'u8[16384]{0}', space=vmem, size = 0x4000, scoped, tag = 'input window, operand 5, single buffered']
    #allocation12 [shape = 'u8[8192]{0}', space=vmem, size = 0x2000, scoped, tag = 'output window, operand 0, single buffered']
    %12 = vsyncpa [#allocation4], 0
    %13 = vsyncpa [#allocation7], 0
    %14 = vsyncpa [#allocation10], 0
    %15 = vsyncpa [#allocation5], 0
    // Predicated region
    $region2: #{tpu_custom_call.1} parent=1 // pred_check
      _
    $region3: #{tpu_custom_call.1} parent=1 // pred_check_branch
      %17 = sbr.rel (0) target = $region5
    $region4: #{tpu_custom_call.1} parent=1 // pred_region
      %s19 = ssub.s32 256, 256
      %20 = vsyncadd [#allocation4], %s19
      %s21 = sshll.u32 [#allocation3], 4
      %s22 = int_to_ptr.vmem [resolvable:$true] %s21
      %27 = dma.hbm_to_vmem [thread:$0]  %s0, 256, %s22, [#allocation4], 128, 128, 8
    $region5: #{tpu_custom_call.1} parent=1 // pred_fallthru
      _
    // Predicated region
    $region6: #{tpu_custom_call.1} parent=1 // pred_check
      _
    $region7: #{tpu_custom_call.1} parent=1 // pred_check_branch
      %29 = sbr.rel (0) target = $region9
    $region8: #{tpu_custom_call.1} parent=1 // pred_region
      %s31 = ssub.s32 512, 512
      %32 = vsyncadd [#allocation7], %s31
      %s33 = sshll.u32 [#allocation6], 4
      %s34 = int_to_ptr.vmem [resolvable:$true] %s33
      %39 = dma.hbm_to_vmem [thread:$0]  %s1, 512, %s34, [#allocation7], 128, 128, 8
    $region9: #{tpu_custom_call.1} parent=1 // pred_fallthru
      _
    // Predicated region
    $region10: #{tpu_custom_call.1} parent=1 // pred_check
      _
    $region11: #{tpu_custom_call.1} parent=1 // pred_check_branch
      %41 = sbr.rel (0) target = $region13
    $region12: #{tpu_custom_call.1} parent=1 // pred_region
      %s43 = ssub.s32 512, 512
      %44 = vsyncadd [#allocation7], %s43
      %s45 = sshll.u32 [#allocation8], 4
      %s46 = int_to_ptr.vmem [resolvable:$true] %s45
      %51 = dma.hbm_to_vmem [thread:$0]  %s2, 512, %s46, [#allocation7], 128, 128, 8
    $region13: #{tpu_custom_call.1} parent=1 // pred_fallthru
      _
    // Predicated region
    $region14: #{tpu_custom_call.1} parent=1 // pred_check
      _
    $region15: #{tpu_custom_call.1} parent=1 // pred_check_branch
      %53 = sbr.rel (0) target = $region17
    $region16: #{tpu_custom_call.1} parent=1 // pred_region
      _
    $region17: #{tpu_custom_call.1} parent=1 // pred_fallthru
      _
    // Predicated region
    $region18: #{tpu_custom_call.1} parent=1 // pred_check
      _
    $region19: #{tpu_custom_call.1} parent=1 // pred_check_branch
      %55 = sbr.rel (0) target = $region21
    $region20: #{tpu_custom_call.1} parent=1 // pred_region
      %s57 = ssub.s32 512, 512
      %58 = vsyncadd [#allocation10], %s57
      %s59 = sshll.u32 [#allocation9], 4
      %s60 = int_to_ptr.vmem [resolvable:$true] %s59
      %65 = dma.hbm_to_vmem [thread:$0]  %s4, 512, %s60, [#allocation10], 128, 128, 8
    $region21: #{tpu_custom_call.1} parent=1 // pred_fallthru
      _
    // Predicated region
    $region22: #{tpu_custom_call.1} parent=1 // pred_check
      _
    $region23: #{tpu_custom_call.1} parent=1 // pred_check_branch
      %67 = sbr.rel (0) target = $region25
    $region24: #{tpu_custom_call.1} parent=1 // pred_region
      %s69 = ssub.s32 512, 512
      %70 = vsyncadd [#allocation10], %s69
      %s71 = sshll.u32 [#allocation11], 4
      %s72 = int_to_ptr.vmem [resolvable:$true] %s71
      %77 = dma.hbm_to_vmem [thread:$0]  %s5, 512, %s72, [#allocation10], 128, 128, 8
    $region25: #{tpu_custom_call.1} parent=1 // pred_fallthru
      _
    // Predicated region
    $region26: #{tpu_custom_call.1} parent=1 // pred_check
      _
    $region27: #{tpu_custom_call.1} parent=1 // pred_check_branch
      %79 = sbr.rel (0) target = $region29
    $region28: #{tpu_custom_call.1} parent=1 // pred_region
      _
    $region29: #{tpu_custom_call.1} parent=1 // pred_fallthru
      _
    // Predicated region
    $region30: #{tpu_custom_call.1} parent=1 // pred_check
      _
    $region31: #{tpu_custom_call.1} parent=1 // pred_check_branch
      %81 = sbr.rel (0) target = $region33
    $region32: #{tpu_custom_call.1} parent=1 // pred_region
      %82 = dma.done [#allocation4], 256
    $region33: #{tpu_custom_call.1} parent=1 // pred_fallthru
      _
    // Predicated region
    $region34: #{tpu_custom_call.1} parent=1 // pred_check
      _
    $region35: #{tpu_custom_call.1} parent=1 // pred_check_branch
      %84 = sbr.rel (0) target = $region37
    $region36: #{tpu_custom_call.1} parent=1 // pred_region
      %85 = dma.done [#allocation7], 512
    $region37: #{tpu_custom_call.1} parent=1 // pred_fallthru
      _
    // Predicated region
    $region38: #{tpu_custom_call.1} parent=1 // pred_check
      _
    $region39: #{tpu_custom_call.1} parent=1 // pred_check_branch
      %87 = sbr.rel (0) target = $region41
    $region40: #{tpu_custom_call.1} parent=1 // pred_region
      %88 = dma.done [#allocation7], 512
    $region41: #{tpu_custom_call.1} parent=1 // pred_fallthru
      _
    // Predicated region
    $region42: #{tpu_custom_call.1} parent=1 // pred_check
      _
    $region43: #{tpu_custom_call.1} parent=1 // pred_check_branch
      %90 = sbr.rel (0) target = $region45
    $region44: #{tpu_custom_call.1} parent=1 // pred_region
      %91 = dma.done [#allocation10], 512
    $region45: #{tpu_custom_call.1} parent=1 // pred_fallthru
      _
    // Predicated region
    $region46: #{tpu_custom_call.1} parent=1 // pred_check
      _
    $region47: #{tpu_custom_call.1} parent=1 // pred_check_branch
      %93 = sbr.rel (0) target = $region49
    $region48: #{tpu_custom_call.1} parent=1 // pred_region
      %94 = dma.done [#allocation10], 512
    $region49: #{tpu_custom_call.1} parent=1 // pred_fallthru
      _
    %v95 = vld [vmem:[#allocation6] sm:$0xff]
    %v96 = vld [vmem:[#allocation6 + $0x8] sm:$0xff]
    %v97 = vld [vmem:[#allocation6 + $0x10] sm:$0xff]
    %v98 = vld [vmem:[#allocation6 + $0x18] sm:$0xff]
    %v99 = vld [vmem:[#allocation8] sm:$0xff]
    %v100 = vld [vmem:[#allocation8 + $0x8] sm:$0xff]
    %v101 = vld [vmem:[#allocation8 + $0x10] sm:$0xff]
    %v102 = vld [vmem:[#allocation8 + $0x18] sm:$0xff]
    %v103 = vld [vmem:[%s3] sm:$0x1]
    %v104 = vld [vmem:[#allocation3] sm:$0xff]
    %v105 = vld [vmem:[#allocation3 + $0x8] sm:$0xff]
    %v107 = vlaneseq
    %v108 = vshrl.u32 %v107, 7
    %v109 = vsub.s32 0, %v108
    %v110 = vrot.slane %v103, %v109
    %vm112 = vcmask 261120
    %v114 = vsel %vm112, %v104, 0
    %v117 = vsel %vm112, %v105, 0
    %119 = vmatprep.subr.mxu0 0.0
    %120 = vmatpush1.msra.mxu0 %v95
    %121 = vmatprep.subr.mxu0 0.0
    %122 = vmatpush1.msra.mxu0 %v96
    %123 = vmatprep.subr.mxu0 0.0
    %124 = vmatpush1.msra.mxu0 %v97
    %125 = vmatprep.subr.mxu0 0.0
    %126 = vmatpush1.msra.mxu0 %v98
    %127 = vmatprep.subr.mxu0 0.0
    %128 = vmatpush1.msra.mxu0 0.0
    %129 = vmatprep.subr.mxu0 0.0
    %130 = vmatpush1.msra.mxu0 0.0
    %131 = vmatprep.subr.mxu0 0.0
    %132 = vmatpush1.msra.mxu0 0.0
    %133 = vmatprep.subr.mxu0 0.0
    %134 = vmatpush1.msra.mxu0 0.0
    %135 = vmatprep.subr.mxu0 0.0
    %136 = vmatpush1.msra.mxu0 0.0
    %137 = vmatprep.subr.mxu0 0.0
    %138 = vmatpush1.msra.mxu0 0.0
    %139 = vmatprep.subr.mxu0 0.0
    %140 = vmatpush1.msra.mxu0 0.0
    %141 = vmatprep.subr.mxu0 0.0
    %142 = vmatpush1.msra.mxu0 0.0
    %143 = vmatprep.subr.mxu0 0.0
    %144 = vmatpush1.msra.mxu0 0.0
    %145 = vmatprep.subr.mxu0 0.0
    %146 = vmatpush1.msra.mxu0 0.0
    %147 = vmatprep.subr.mxu0 0.0
    %148 = vmatpush1.msra.mxu0 0.0
    %149 = vmatprep.subr.mxu0 0.0
    %150 = vmatpush1.msra.mxu0 0.0
    %151 = vmatprep.subr.mxu0 0.0
    %152 = vmatpush1.msra.mxu0 0.0
    %153 = vmatprep.subr.mxu0 0.0
    %154 = vmatpush1.msra.mxu0 0.0
    %155 = vmatprep.subr.mxu0 0.0
    %156 = vmatpush1.msra.mxu0 0.0
    %157 = vmatprep.subr.mxu0 0.0
    %158 = vmatpush1.msra.mxu0 0.0
    %159 = vmatprep.subr.mxu0 0.0
    %160 = vmatpush1.msra.mxu0 0.0
    %161 = vmatprep.subr.mxu0 0.0
    %162 = vmatpush1.msra.mxu0 0.0
    %163 = vmatprep.subr.mxu0 0.0
    %164 = vmatpush1.msra.mxu0 0.0
    %165 = vmatprep.subr.mxu0 0.0
    %166 = vmatpush1.msra.mxu0 0.0
    %167 = vmatprep.subr.mxu0 0.0
    %168 = vmatpush1.msra.mxu0 0.0
    %169 = vmatprep.subr.mxu0 0.0
    %170 = vmatpush1.msra.mxu0 0.0
    %171 = vmatprep.subr.mxu0 0.0
    %172 = vmatpush1.msra.mxu0 0.0
    %173 = vmatprep.subr.mxu0 0.0
    %174 = vmatpush1.msra.mxu0 0.0
    %175 = vmatprep.subr.mxu0 0.0
    %176 = vmatpush1.msra.mxu0 0.0
    %177 = vmatprep.subr.mxu0 0.0
    %178 = vmatpush1.msra.mxu0 0.0
    %179 = vmatprep.subr.mxu0 0.0
    %180 = vmatpush1.msra.mxu0 0.0
    %181 = vmatprep.subr.mxu0 0.0
    %182 = vmatpush1.msra.mxu0 0.0
    %183 = vmatprep.mubr.f32.mxu0 0.0
    %184 = vmatmul.mubr.f32.gmra.mrb[0].mxu0 %v114
    %v185 = vpop.f32.mrb[0].mxu0
    %v186 = vadd.f32 %v110, %v185
    %v187 = vpop.f32.mrb[0].mxu0
    %188 = vmatprep.mubr.f32.mxu0 0.0
    %189 = vmatmul.mubr.f32.gmra.mrb[0].mxu0 %v117
    %v190 = vpop.f32.mrb[0].mxu0
    %v191 = vadd.f32 %v110, %v190
    %v192 = vpop.f32.mrb[0].mxu0
    %193 = vdwg.mxu0
    %194 = vst [vmem:[#allocation2] sm:$0xff] %v186
    %195 = vst [vmem:[#allocation2 + $0x8] sm:$0xff] %v191
    %v196 = vld [vmem:[#allocation2] sm:$0x3]
    %v198 = vsel %vm112, 0.0, 0
    %200 = vmatprep.subr.mxu0 0.0
    %201 = vmatpush1.msra.mxu0 %v99
    %202 = vmatprep.subr.mxu0 0.0
    %203 = vmatpush1.msra.mxu0 %v100
    %204 = vmatprep.subr.mxu0 0.0
    %205 = vmatpush1.msra.mxu0 %v101
    %206 = vmatprep.subr.mxu0 0.0
    %207 = vmatpush1.msra.mxu0 %v102
    %208 = vmatprep.subr.mxu0 0.0
    %209 = vmatpush1.msra.mxu0 0.0
    %210 = vmatprep.subr.mxu0 0.0
    %211 = vmatpush1.msra.mxu0 0.0
    %212 = vmatprep.subr.mxu0 0.0
    %213 = vmatpush1.msra.mxu0 0.0
    %214 = vmatprep.subr.mxu0 0.0
    %215 = vmatpush1.msra.mxu0 0.0
    %216 = vmatprep.subr.mxu0 0.0
    %217 = vmatpush1.msra.mxu0 0.0
    %218 = vmatprep.subr.mxu0 0.0
    %219 = vmatpush1.msra.mxu0 0.0
    %220 = vmatprep.subr.mxu0 0.0
    %221 = vmatpush1.msra.mxu0 0.0
    %222 = vmatprep.subr.mxu0 0.0
    %223 = vmatpush1.msra.mxu0 0.0
    %224 = vmatprep.subr.mxu0 0.0
    %225 = vmatpush1.msra.mxu0 0.0
    %226 = vmatprep.subr.mxu0 0.0
    %227 = vmatpush1.msra.mxu0 0.0
    %228 = vmatprep.subr.mxu0 0.0
    %229 = vmatpush1.msra.mxu0 0.0
    %230 = vmatprep.subr.mxu0 0.0
    %231 = vmatpush1.msra.mxu0 0.0
    %232 = vmatprep.subr.mxu0 0.0
    %233 = vmatpush1.msra.mxu0 0.0
    %234 = vmatprep.subr.mxu0 0.0
    %235 = vmatpush1.msra.mxu0 0.0
    %236 = vmatprep.subr.mxu0 0.0
    %237 = vmatpush1.msra.mxu0 0.0
    %238 = vmatprep.subr.mxu0 0.0
    %239 = vmatpush1.msra.mxu0 0.0
    %240 = vmatprep.subr.mxu0 0.0
    %241 = vmatpush1.msra.mxu0 0.0
    %242 = vmatprep.subr.mxu0 0.0
    %243 = vmatpush1.msra.mxu0 0.0
    %244 = vmatprep.subr.mxu0 0.0
    %245 = vmatpush1.msra.mxu0 0.0
    %246 = vmatprep.subr.mxu0 0.0
    %247 = vmatpush1.msra.mxu0 0.0
    %248 = vmatprep.subr.mxu0 0.0
    %249 = vmatpush1.msra.mxu0 0.0
    %250 = vmatprep.subr.mxu0 0.0
    %251 = vmatpush1.msra.mxu0 0.0
    %252 = vmatprep.subr.mxu0 0.0
    %253 = vmatpush1.msra.mxu0 0.0
    %254 = vmatprep.subr.mxu0 0.0
    %255 = vmatpush1.msra.mxu0 0.0
    %256 = vmatprep.subr.mxu0 0.0
    %257 = vmatpush1.msra.mxu0 0.0
    %258 = vmatprep.subr.mxu0 0.0
    %259 = vmatpush1.msra.mxu0 0.0
    %260 = vmatprep.subr.mxu0 0.0
    %261 = vmatpush1.msra.mxu0 0.0
    %262 = vmatprep.subr.mxu0 0.0
    %263 = vmatpush1.msra.mxu0 0.0
    %264 = vmatprep.mubr.f32.mxu0 0.0
    %265 = vmatmul.mubr.f32.gmra.mrb[0].mxu0 %v198
    %v266 = vpop.f32.mrb[0].mxu0
    %v267 = vadd.f32 0.0, %v266
    %v268 = vpop.f32.mrb[0].mxu0
    %269 = vdwg.mxu0
    %v270 = vadd.f32 %v196, %v267
    %v271 = vxor.u32 %v270, 2147483648
    %v272 = vmul.f32 %v271, 1.442695
    %v273 = vpow.pop %v272
    %v274 = vadd.f32 %v273, 1.0
    %v275 = vrcp.pop %v274
    %v276 = vmul.f32 1.0, %v275
    %v277 = vtanh.pop %v270
    %v278 = vmul.f32 %v276, 0.0
    %280 = vrot.lane.b32.xlu0 %v277, 64
    %v281 = vpop.permute.xlu0 %280
    %v283 = vmul.f32 %v276, %v281
    %285 = vrot.lane.b32.xlu0 %v283, 32
    %v286 = vpop.permute.xlu0 %285
    %v288 = vadd.f32 %v278, %v286
    %v289 = vtanh.pop %v288
    %291 = vrot.lane.b32.xlu0 %v289, 64
    %v292 = vpop.permute.xlu0 %291
    %v294 = vmul.f32 %v276, %v292
    %296 = vrot.lane.b32.xlu0 %v294, 32
    %v297 = vpop.permute.xlu0 %296
    %vm299 = vcmask 254976
    %300 = vst.msk [vmem:[#allocation12] sm:$0x3] %vm299, %v297
    %v301 = vld [vmem:[#allocation2 + $0x2] sm:$0x3]
    %v302 = vsel %vm112, %v297, 0
    %304 = vmatprep.subr.mxu0 0.0
    %305 = vmatpush1.msra.mxu0 %v99
    %306 = vmatprep.subr.mxu0 0.0
    %307 = vmatpush1.msra.mxu0 %v100
    %308 = vmatprep.subr.mxu0 0.0
    %309 = vmatpush1.msra.mxu0 %v101
    %310 = vmatprep.subr.mxu0 0.0
    %311 = vmatpush1.msra.mxu0 %v102
    %312 = vmatprep.subr.mxu0 0.0
    %313 = vmatpush1.msra.mxu0 0.0
    %314 = vmatprep.subr.mxu0 0.0
    %315 = vmatpush1.msra.mxu0 0.0
    %316 = vmatprep.subr.mxu0 0.0
    %317 = vmatpush1.msra.mxu0 0.0
    %318 = vmatprep.subr.mxu0 0.0
    %319 = vmatpush1.msra.mxu0 0.0
    %320 = vmatprep.subr.mxu0 0.0
    %321 = vmatpush1.msra.mxu0 0.0
    %322 = vmatprep.subr.mxu0 0.0
    %323 = vmatpush1.msra.mxu0 0.0
    %324 = vmatprep.subr.mxu0 0.0
    %325 = vmatpush1.msra.mxu0 0.0
    %326 = vmatprep.subr.mxu0 0.0
    %327 = vmatpush1.msra.mxu0 0.0
    %328 = vmatprep.subr.mxu0 0.0
    %329 = vmatpush1.msra.mxu0 0.0
    %330 = vmatprep.subr.mxu0 0.0
    %331 = vmatpush1.msra.mxu0 0.0
    %332 = vmatprep.subr.mxu0 0.0
    %333 = vmatpush1.msra.mxu0 0.0
    %334 = vmatprep.subr.mxu0 0.0
    %335 = vmatpush1.msra.mxu0 0.0
    %336 = vmatprep.subr.mxu0 0.0
    %337 = vmatpush1.msra.mxu0 0.0
    %338 = vmatprep.subr.mxu0 0.0
    %339 = vmatpush1.msra.mxu0 0.0
    %340 = vmatprep.subr.mxu0 0.0
    %341 = vmatpush1.msra.mxu0 0.0
    %342 = vmatprep.subr.mxu0 0.0
    %343 = vmatpush1.msra.mxu0 0.0
    %344 = vmatprep.subr.mxu0 0.0
    %345 = vmatpush1.msra.mxu0 0.0
    %346 = vmatprep.subr.mxu0 0.0
    %347 = vmatpush1.msra.mxu0 0.0
    %348 = vmatprep.subr.mxu0 0.0
    %349 = vmatpush1.msra.mxu0 0.0
    %350 = vmatprep.subr.mxu0 0.0
    %351 = vmatpush1.msra.mxu0 0.0
    %352 = vmatprep.subr.mxu0 0.0
    %353 = vmatpush1.msra.mxu0 0.0
    %354 = vmatprep.subr.mxu0 0.0
    %355 = vmatpush1.msra.mxu0 0.0
    %356 = vmatprep.subr.mxu0 0.0
    %357 = vmatpush1.msra.mxu0 0.0
    %358 = vmatprep.subr.mxu0 0.0
    %359 = vmatpush1.msra.mxu0 0.0
    %360 = vmatprep.subr.mxu0 0.0
    %361 = vmatpush1.msra.mxu0 0.0
    %362 = vmatprep.subr.mxu0 0.0
    %363 = vmatpush1.msra.mxu0 0.0
    %364 = vmatprep.subr.mxu0 0.0
    %365 = vmatpush1.msra.mxu0 0.0
    %366 = vmatprep.subr.mxu0 0.0
    %367 = vmatpush1.msra.mxu0 0.0
    %368 = vmatprep.mubr.f32.mxu0 0.0
    %369 = vmatmul.mubr.f32.gmra.mrb[0].mxu0 %v302
    %v370 = vpop.f32.mrb[0].mxu0
    %v371 = vadd.f32 0.0, %v370
    %v372 = vpop.f32.mrb[0].mxu0
    %373 = vdwg.mxu0
    %v374 = vadd.f32 %v301, %v371
    %v375 = vxor.u32 %v374, 2147483648
    %v376 = vmul.f32 %v375, 1.442695
    %v377 = vpow.pop %v376
    %v378 = vadd.f32 %v377, 1.0
    %v379 = vrcp.pop %v378
    %v380 = vmul.f32 1.0, %v379
    %v381 = vtanh.pop %v374
    %v382 = vmul.f32 %v380, %v288
    %384 = vrot.lane.b32.xlu0 %v381, 64
    %v385 = vpop.permute.xlu0 %384
    %v387 = vmul.f32 %v380, %v385
    %389 = vrot.lane.b32.xlu0 %v387, 32
    %v390 = vpop.permute.xlu0 %389
    %v392 = vadd.f32 %v382, %v390
    %v393 = vtanh.pop %v392
    %395 = vrot.lane.b32.xlu0 %v393, 64
    %v396 = vpop.permute.xlu0 %395
    %v398 = vmul.f32 %v380, %v396
    %400 = vrot.lane.b32.xlu0 %v398, 32
    %v401 = vpop.permute.xlu0 %400
    %403 = vst.msk [vmem:[#allocation12 + $0x2] sm:$0x3] %vm299, %v401
    %v404 = vld [vmem:[#allocation2 + $0x4] sm:$0x3]
    %v405 = vsel %vm112, %v401, 0
    %407 = vmatprep.subr.mxu0 0.0
    %408 = vmatpush1.msra.mxu0 %v99
    %409 = vmatprep.subr.mxu0 0.0
    %410 = vmatpush1.msra.mxu0 %v100
    %411 = vmatprep.subr.mxu0 0.0
    %412 = vmatpush1.msra.mxu0 %v101
    %413 = vmatprep.subr.mxu0 0.0
    %414 = vmatpush1.msra.mxu0 %v102
    %415 = vmatprep.subr.mxu0 0.0
    %416 = vmatpush1.msra.mxu0 0.0
    %417 = vmatprep.subr.mxu0 0.0
    %418 = vmatpush1.msra.mxu0 0.0
    %419 = vmatprep.subr.mxu0 0.0
    %420 = vmatpush1.msra.mxu0 0.0
    %421 = vmatprep.subr.mxu0 0.0
    %422 = vmatpush1.msra.mxu0 0.0
    %423 = vmatprep.subr.mxu0 0.0
    %424 = vmatpush1.msra.mxu0 0.0
    %425 = vmatprep.subr.mxu0 0.0
    %426 = vmatpush1.msra.mxu0 0.0
    %427 = vmatprep.subr.mxu0 0.0
    %428 = vmatpush1.msra.mxu0 0.0
    %429 = vmatprep.subr.mxu0 0.0
    %430 = vmatpush1.msra.mxu0 0.0
    %431 = vmatprep.subr.mxu0 0.0
    %432 = vmatpush1.msra.mxu0 0.0
    %433 = vmatprep.subr.mxu0 0.0
    %434 = vmatpush1.msra.mxu0 0.0
    %435 = vmatprep.subr.mxu0 0.0
    %436 = vmatpush1.msra.mxu0 0.0
    %437 = vmatprep.subr.mxu0 0.0
    %438 = vmatpush1.msra.mxu0 0.0
    %439 = vmatprep.subr.mxu0 0.0
    %440 = vmatpush1.msra.mxu0 0.0
    %441 = vmatprep.subr.mxu0 0.0
    %442 = vmatpush1.msra.mxu0 0.0
    %443 = vmatprep.subr.mxu0 0.0
    %444 = vmatpush1.msra.mxu0 0.0
    %445 = vmatprep.subr.mxu0 0.0
    %446 = vmatpush1.msra.mxu0 0.0
    %447 = vmatprep.subr.mxu0 0.0
    %448 = vmatpush1.msra.mxu0 0.0
    %449 = vmatprep.subr.mxu0 0.0
    %450 = vmatpush1.msra.mxu0 0.0
    %451 = vmatprep.subr.mxu0 0.0
    %452 = vmatpush1.msra.mxu0 0.0
    %453 = vmatprep.subr.mxu0 0.0
    %454 = vmatpush1.msra.mxu0 0.0
    %455 = vmatprep.subr.mxu0 0.0
    %456 = vmatpush1.msra.mxu0 0.0
    %457 = vmatprep.subr.mxu0 0.0
    %458 = vmatpush1.msra.mxu0 0.0
    %459 = vmatprep.subr.mxu0 0.0
    %460 = vmatpush1.msra.mxu0 0.0
    %461 = vmatprep.subr.mxu0 0.0
    %462 = vmatpush1.msra.mxu0 0.0
    %463 = vmatprep.subr.mxu0 0.0
    %464 = vmatpush1.msra.mxu0 0.0
    %465 = vmatprep.subr.mxu0 0.0
    %466 = vmatpush1.msra.mxu0 0.0
    %467 = vmatprep.subr.mxu0 0.0
    %468 = vmatpush1.msra.mxu0 0.0
    %469 = vmatprep.subr.mxu0 0.0
    %470 = vmatpush1.msra.mxu0 0.0
    %471 = vmatprep.mubr.f32.mxu0 0.0
    %472 = vmatmul.mubr.f32.gmra.mrb[0].mxu0 %v405
    %v473 = vpop.f32.mrb[0].mxu0
    %v474 = vadd.f32 0.0, %v473
    %v475 = vpop.f32.mrb[0].mxu0
    %476 = vdwg.mxu0
    %v477 = vadd.f32 %v404, %v474
    %v478 = vxor.u32 %v477, 2147483648
    %v479 = vmul.f32 %v478, 1.442695
    %v480 = vpow.pop %v479
    %v481 = vadd.f32 %v480, 1.0
    %v482 = vrcp.pop %v481
    %v483 = vmul.f32 1.0, %v482
    %v484 = vtanh.pop %v477
    %v485 = vmul.f32 %v483, %v392
    %487 = vrot.lane.b32.xlu0 %v484, 64
    %v488 = vpop.permute.xlu0 %487
    %v490 = vmul.f32 %v483, %v488
    %492 = vrot.lane.b32.xlu0 %v490, 32
    %v493 = vpop.permute.xlu0 %492
    %v495 = vadd.f32 %v485, %v493
    %v496 = vtanh.pop %v495
    %498 = vrot.lane.b32.xlu0 %v496, 64
    %v499 = vpop.permute.xlu0 %498
    %v501 = vmul.f32 %v483, %v499
    %503 = vrot.lane.b32.xlu0 %v501, 32
    %v504 = vpop.permute.xlu0 %503
    %506 = vst.msk [vmem:[#allocation12 + $0x4] sm:$0x3] %vm299, %v504
    %v507 = vld [vmem:[#allocation2 + $0x6] sm:$0x3]
    %v508 = vsel %vm112, %v504, 0
    %510 = vmatprep.subr.mxu0 0.0
    %511 = vmatpush1.msra.mxu0 %v99
    %512 = vmatprep.subr.mxu0 0.0
    %513 = vmatpush1.msra.mxu0 %v100
    %514 = vmatprep.subr.mxu0 0.0
    %515 = vmatpush1.msra.mxu0 %v101
    %516 = vmatprep.subr.mxu0 0.0
    %517 = vmatpush1.msra.mxu0 %v102
    %518 = vmatprep.subr.mxu0 0.0
    %519 = vmatpush1.msra.mxu0 0.0
    %520 = vmatprep.subr.mxu0 0.0
    %521 = vmatpush1.msra.mxu0 0.0
    %522 = vmatprep.subr.mxu0 0.0
    %523 = vmatpush1.msra.mxu0 0.0
    %524 = vmatprep.subr.mxu0 0.0
    %525 = vmatpush1.msra.mxu0 0.0
    %526 = vmatprep.subr.mxu0 0.0
    %527 = vmatpush1.msra.mxu0 0.0
    %528 = vmatprep.subr.mxu0 0.0
    %529 = vmatpush1.msra.mxu0 0.0
    %530 = vmatprep.subr.mxu0 0.0
    %531 = vmatpush1.msra.mxu0 0.0
    %532 = vmatprep.subr.mxu0 0.0
    %533 = vmatpush1.msra.mxu0 0.0
    %534 = vmatprep.subr.mxu0 0.0
    %535 = vmatpush1.msra.mxu0 0.0
    %536 = vmatprep.subr.mxu0 0.0
    %537 = vmatpush1.msra.mxu0 0.0
    %538 = vmatprep.subr.mxu0 0.0
    %539 = vmatpush1.msra.mxu0 0.0
    %540 = vmatprep.subr.mxu0 0.0
    %541 = vmatpush1.msra.mxu0 0.0
    %542 = vmatprep.subr.mxu0 0.0
    %543 = vmatpush1.msra.mxu0 0.0
    %544 = vmatprep.subr.mxu0 0.0
    %545 = vmatpush1.msra.mxu0 0.0
    %546 = vmatprep.subr.mxu0 0.0
    %547 = vmatpush1.msra.mxu0 0.0
    %548 = vmatprep.subr.mxu0 0.0
    %549 = vmatpush1.msra.mxu0 0.0
    %550 = vmatprep.subr.mxu0 0.0
    %551 = vmatpush1.msra.mxu0 0.0
    %552 = vmatprep.subr.mxu0 0.0
    %553 = vmatpush1.msra.mxu0 0.0
    %554 = vmatprep.subr.mxu0 0.0
    %555 = vmatpush1.msra.mxu0 0.0
    %556 = vmatprep.subr.mxu0 0.0
    %557 = vmatpush1.msra.mxu0 0.0
    %558 = vmatprep.subr.mxu0 0.0
    %559 = vmatpush1.msra.mxu0 0.0
    %560 = vmatprep.subr.mxu0 0.0
    %561 = vmatpush1.msra.mxu0 0.0
    %562 = vmatprep.subr.mxu0 0.0
    %563 = vmatpush1.msra.mxu0 0.0
    %564 = vmatprep.subr.mxu0 0.0
    %565 = vmatpush1.msra.mxu0 0.0
    %566 = vmatprep.subr.mxu0 0.0
    %567 = vmatpush1.msra.mxu0 0.0
    %568 = vmatprep.subr.mxu0 0.0
    %569 = vmatpush1.msra.mxu0 0.0
    %570 = vmatprep.subr.mxu0 0.0
    %571 = vmatpush1.msra.mxu0 0.0
    %572 = vmatprep.subr.mxu0 0.0
    %573 = vmatpush1.msra.mxu0 0.0
    %574 = vmatprep.mubr.f32.mxu0 0.0
    %575 = vmatmul.mubr.f32.gmra.mrb[0].mxu0 %v508
    %v576 = vpop.f32.mrb[0].mxu0
    %v577 = vadd.f32 0.0, %v576
    %v578 = vpop.f32.mrb[0].mxu0
    %579 = vdwg.mxu0
    %v580 = vadd.f32 %v507, %v577
    %v581 = vxor.u32 %v580, 2147483648
    %v582 = vmul.f32 %v581, 1.442695
    %v583 = vpow.pop %v582
    %v584 = vadd.f32 %v583, 1.0
    %v585 = vrcp.pop %v584
    %v586 = vmul.f32 1.0, %v585
    %v587 = vtanh.pop %v580
    %v588 = vmul.f32 %v586, %v495
    %590 = vrot.lane.b32.xlu0 %v587, 64
    %v591 = vpop.permute.xlu0 %590
    %v593 = vmul.f32 %v586, %v591
    %595 = vrot.lane.b32.xlu0 %v593, 32
    %v596 = vpop.permute.xlu0 %595
    %v598 = vadd.f32 %v588, %v596
    %v599 = vtanh.pop %v598
    %601 = vrot.lane.b32.xlu0 %v599, 64
    %v602 = vpop.permute.xlu0 %601
    %v604 = vmul.f32 %v586, %v602
    %606 = vrot.lane.b32.xlu0 %v604, 32
    %v607 = vpop.permute.xlu0 %606
    %609 = vst.msk [vmem:[#allocation12 + $0x6] sm:$0x3] %vm299, %v607
    %v610 = vld [vmem:[#allocation2 + $0x8] sm:$0x3]
    %v611 = vsel %vm112, %v607, 0
    %613 = vmatprep.subr.mxu0 0.0
    %614 = vmatpush1.msra.mxu0 %v99
    %615 = vmatprep.subr.mxu0 0.0
    %616 = vmatpush1.msra.mxu0 %v100
    %617 = vmatprep.subr.mxu0 0.0
    %618 = vmatpush1.msra.mxu0 %v101
    %619 = vmatprep.subr.mxu0 0.0
    %620 = vmatpush1.msra.mxu0 %v102
    %621 = vmatprep.subr.mxu0 0.0
    %622 = vmatpush1.msra.mxu0 0.0
    %623 = vmatprep.subr.mxu0 0.0
    %624 = vmatpush1.msra.mxu0 0.0
    %625 = vmatprep.subr.mxu0 0.0
    %626 = vmatpush1.msra.mxu0 0.0
    %627 = vmatprep.subr.mxu0 0.0
    %628 = vmatpush1.msra.mxu0 0.0
    %629 = vmatprep.subr.mxu0 0.0
    %630 = vmatpush1.msra.mxu0 0.0
    %631 = vmatprep.subr.mxu0 0.0
    %632 = vmatpush1.msra.mxu0 0.0
    %633 = vmatprep.subr.mxu0 0.0
    %634 = vmatpush1.msra.mxu0 0.0
    %635 = vmatprep.subr.mxu0 0.0
    %636 = vmatpush1.msra.mxu0 0.0
    %637 = vmatprep.subr.mxu0 0.0
    %638 = vmatpush1.msra.mxu0 0.0
    %639 = vmatprep.subr.mxu0 0.0
    %640 = vmatpush1.msra.mxu0 0.0
    %641 = vmatprep.subr.mxu0 0.0
    %642 = vmatpush1.msra.mxu0 0.0
    %643 = vmatprep.subr.mxu0 0.0
    %644 = vmatpush1.msra.mxu0 0.0
    %645 = vmatprep.subr.mxu0 0.0
    %646 = vmatpush1.msra.mxu0 0.0
    %647 = vmatprep.subr.mxu0 0.0
    %648 = vmatpush1.msra.mxu0 0.0
    %649 = vmatprep.subr.mxu0 0.0
    %650 = vmatpush1.msra.mxu0 0.0
    %651 = vmatprep.subr.mxu0 0.0
    %652 = vmatpush1.msra.mxu0 0.0
    %653 = vmatprep.subr.mxu0 0.0
    %654 = vmatpush1.msra.mxu0 0.0
    %655 = vmatprep.subr.mxu0 0.0
    %656 = vmatpush1.msra.mxu0 0.0
    %657 = vmatprep.subr.mxu0 0.0
    %658 = vmatpush1.msra.mxu0 0.0
    %659 = vmatprep.subr.mxu0 0.0
    %660 = vmatpush1.msra.mxu0 0.0
    %661 = vmatprep.subr.mxu0 0.0
    %662 = vmatpush1.msra.mxu0 0.0
    %663 = vmatprep.subr.mxu0 0.0
    %664 = vmatpush1.msra.mxu0 0.0
    %665 = vmatprep.subr.mxu0 0.0
    %666 = vmatpush1.msra.mxu0 0.0
    %667 = vmatprep.subr.mxu0 0.0
    %668 = vmatpush1.msra.mxu0 0.0
    %669 = vmatprep.subr.mxu0 0.0
    %670 = vmatpush1.msra.mxu0 0.0
    %671 = vmatprep.subr.mxu0 0.0
    %672 = vmatpush1.msra.mxu0 0.0
    %673 = vmatprep.subr.mxu0 0.0
    %674 = vmatpush1.msra.mxu0 0.0
    %675 = vmatprep.subr.mxu0 0.0
    %676 = vmatpush1.msra.mxu0 0.0
    %677 = vmatprep.mubr.f32.mxu0 0.0
    %678 = vmatmul.mubr.f32.gmra.mrb[0].mxu0 %v611
    %v679 = vpop.f32.mrb[0].mxu0
    %v680 = vadd.f32 0.0, %v679
    %v681 = vpop.f32.mrb[0].mxu0
    %682 = vdwg.mxu0
    %v683 = vadd.f32 %v610, %v680
    %v684 = vxor.u32 %v683, 2147483648
    %v685 = vmul.f32 %v684, 1.442695
    %v686 = vpow.pop %v685
    %v687 = vadd.f32 %v686, 1.0
    %v688 = vrcp.pop %v687
    %v689 = vmul.f32 1.0, %v688
    %v690 = vtanh.pop %v683
    %v691 = vmul.f32 %v689, %v598
    %693 = vrot.lane.b32.xlu0 %v690, 64
    %v694 = vpop.permute.xlu0 %693
    %v696 = vmul.f32 %v689, %v694
    %698 = vrot.lane.b32.xlu0 %v696, 32
    %v699 = vpop.permute.xlu0 %698
    %v701 = vadd.f32 %v691, %v699
    %v702 = vtanh.pop %v701
    %704 = vrot.lane.b32.xlu0 %v702, 64
    %v705 = vpop.permute.xlu0 %704
    %v707 = vmul.f32 %v689, %v705
    %709 = vrot.lane.b32.xlu0 %v707, 32
    %v710 = vpop.permute.xlu0 %709
    %712 = vst.msk [vmem:[#allocation12 + $0x8] sm:$0x3] %vm299, %v710
    %v713 = vld [vmem:[#allocation2 + $0xa] sm:$0x3]
    %v714 = vsel %vm112, %v710, 0
    %716 = vmatprep.subr.mxu0 0.0
    %717 = vmatpush1.msra.mxu0 %v99
    %718 = vmatprep.subr.mxu0 0.0
    %719 = vmatpush1.msra.mxu0 %v100
    %720 = vmatprep.subr.mxu0 0.0
    %721 = vmatpush1.msra.mxu0 %v101
    %722 = vmatprep.subr.mxu0 0.0
    %723 = vmatpush1.msra.mxu0 %v102
    %724 = vmatprep.subr.mxu0 0.0
    %725 = vmatpush1.msra.mxu0 0.0
    %726 = vmatprep.subr.mxu0 0.0
    %727 = vmatpush1.msra.mxu0 0.0
    %728 = vmatprep.subr.mxu0 0.0
    %729 = vmatpush1.msra.mxu0 0.0
    %730 = vmatprep.subr.mxu0 0.0
    %731 = vmatpush1.msra.mxu0 0.0
    %732 = vmatprep.subr.mxu0 0.0
    %733 = vmatpush1.msra.mxu0 0.0
    %734 = vmatprep.subr.mxu0 0.0
    %735 = vmatpush1.msra.mxu0 0.0
    %736 = vmatprep.subr.mxu0 0.0
    %737 = vmatpush1.msra.mxu0 0.0
    %738 = vmatprep.subr.mxu0 0.0
    %739 = vmatpush1.msra.mxu0 0.0
    %740 = vmatprep.subr.mxu0 0.0
    %741 = vmatpush1.msra.mxu0 0.0
    %742 = vmatprep.subr.mxu0 0.0
    %743 = vmatpush1.msra.mxu0 0.0
    %744 = vmatprep.subr.mxu0 0.0
    %745 = vmatpush1.msra.mxu0 0.0
    %746 = vmatprep.subr.mxu0 0.0
    %747 = vmatpush1.msra.mxu0 0.0
    %748 = vmatprep.subr.mxu0 0.0
    %749 = vmatpush1.msra.mxu0 0.0
    %750 = vmatprep.subr.mxu0 0.0
    %751 = vmatpush1.msra.mxu0 0.0
    %752 = vmatprep.subr.mxu0 0.0
    %753 = vmatpush1.msra.mxu0 0.0
    %754 = vmatprep.subr.mxu0 0.0
    %755 = vmatpush1.msra.mxu0 0.0
    %756 = vmatprep.subr.mxu0 0.0
    %757 = vmatpush1.msra.mxu0 0.0
    %758 = vmatprep.subr.mxu0 0.0
    %759 = vmatpush1.msra.mxu0 0.0
    %760 = vmatprep.subr.mxu0 0.0
    %761 = vmatpush1.msra.mxu0 0.0
    %762 = vmatprep.subr.mxu0 0.0
    %763 = vmatpush1.msra.mxu0 0.0
    %764 = vmatprep.subr.mxu0 0.0
    %765 = vmatpush1.msra.mxu0 0.0
    %766 = vmatprep.subr.mxu0 0.0
    %767 = vmatpush1.msra.mxu0 0.0
    %768 = vmatprep.subr.mxu0 0.0
    %769 = vmatpush1.msra.mxu0 0.0
    %770 = vmatprep.subr.mxu0 0.0
    %771 = vmatpush1.msra.mxu0 0.0
    %772 = vmatprep.subr.mxu0 0.0
    %773 = vmatpush1.msra.mxu0 0.0
    %774 = vmatprep.subr.mxu0 0.0
    %775 = vmatpush1.msra.mxu0 0.0
    %776 = vmatprep.subr.mxu0 0.0
    %777 = vmatpush1.msra.mxu0 0.0
    %778 = vmatprep.subr.mxu0 0.0
    %779 = vmatpush1.msra.mxu0 0.0
    %780 = vmatprep.mubr.f32.mxu0 0.0
    %781 = vmatmul.mubr.f32.gmra.mrb[0].mxu0 %v714
    %v782 = vpop.f32.mrb[0].mxu0
    %v783 = vadd.f32 0.0, %v782
    %v784 = vpop.f32.mrb[0].mxu0
    %785 = vdwg.mxu0
    %v786 = vadd.f32 %v713, %v783
    %v787 = vxor.u32 %v786, 2147483648
    %v788 = vmul.f32 %v787, 1.442695
    %v789 = vpow.pop %v788
    %v790 = vadd.f32 %v789, 1.0
    %v791 = vrcp.pop %v790
    %v792 = vmul.f32 1.0, %v791
    %v793 = vtanh.pop %v786
    %v794 = vmul.f32 %v792, %v701
    %796 = vrot.lane.b32.xlu0 %v793, 64
    %v797 = vpop.permute.xlu0 %796
    %v799 = vmul.f32 %v792, %v797
    %801 = vrot.lane.b32.xlu0 %v799, 32
    %v802 = vpop.permute.xlu0 %801
    %v804 = vadd.f32 %v794, %v802
    %v805 = vtanh.pop %v804
    %807 = vrot.lane.b32.xlu0 %v805, 64
    %v808 = vpop.permute.xlu0 %807
    %v810 = vmul.f32 %v792, %v808
    %812 = vrot.lane.b32.xlu0 %v810, 32
    %v813 = vpop.permute.xlu0 %812
    %815 = vst.msk [vmem:[#allocation12 + $0xa] sm:$0x3] %vm299, %v813
    %v816 = vld [vmem:[#allocation2 + $0xc] sm:$0x3]
    %v817 = vsel %vm112, %v813, 0
    %819 = vmatprep.subr.mxu0 0.0
    %820 = vmatpush1.msra.mxu0 %v99
    %821 = vmatprep.subr.mxu0 0.0
    %822 = vmatpush1.msra.mxu0 %v100
    %823 = vmatprep.subr.mxu0 0.0
    %824 = vmatpush1.msra.mxu0 %v101
    %825 = vmatprep.subr.mxu0 0.0
    %826 = vmatpush1.msra.mxu0 %v102
    %827 = vmatprep.subr.mxu0 0.0
    %828 = vmatpush1.msra.mxu0 0.0
    %829 = vmatprep.subr.mxu0 0.0
    %830 = vmatpush1.msra.mxu0 0.0
    %831 = vmatprep.subr.mxu0 0.0
    %832 = vmatpush1.msra.mxu0 0.0
    %833 = vmatprep.subr.mxu0 0.0
    %834 = vmatpush1.msra.mxu0 0.0
    %835 = vmatprep.subr.mxu0 0.0
    %836 = vmatpush1.msra.mxu0 0.0
    %837 = vmatprep.subr.mxu0 0.0
    %838 = vmatpush1.msra.mxu0 0.0
    %839 = vmatprep.subr.mxu0 0.0
    %840 = vmatpush1.msra.mxu0 0.0
    %841 = vmatprep.subr.mxu0 0.0
    %842 = vmatpush1.msra.mxu0 0.0
    %843 = vmatprep.subr.mxu0 0.0
    %844 = vmatpush1.msra.mxu0 0.0
    %845 = vmatprep.subr.mxu0 0.0
    %846 = vmatpush1.msra.mxu0 0.0
    %847 = vmatprep.subr.mxu0 0.0
    %848 = vmatpush1.msra.mxu0 0.0
    %849 = vmatprep.subr.mxu0 0.0
    %850 = vmatpush1.msra.mxu0 0.0
    %851 = vmatprep.subr.mxu0 0.0
    %852 = vmatpush1.msra.mxu0 0.0
    %853 = vmatprep.subr.mxu0 0.0
    %854 = vmatpush1.msra.mxu0 0.0
    %855 = vmatprep.subr.mxu0 0.0
    %856 = vmatpush1.msra.mxu0 0.0
    %857 = vmatprep.subr.mxu0 0.0
    %858 = vmatpush1.msra.mxu0 0.0
    %859 = vmatprep.subr.mxu0 0.0
    %860 = vmatpush1.msra.mxu0 0.0
    %861 = vmatprep.subr.mxu0 0.0
    %862 = vmatpush1.msra.mxu0 0.0
    %863 = vmatprep.subr.mxu0 0.0
    %864 = vmatpush1.msra.mxu0 0.0
    %865 = vmatprep.subr.mxu0 0.0
    %866 = vmatpush1.msra.mxu0 0.0
    %867 = vmatprep.subr.mxu0 0.0
    %868 = vmatpush1.msra.mxu0 0.0
    %869 = vmatprep.subr.mxu0 0.0
    %870 = vmatpush1.msra.mxu0 0.0
    %871 = vmatprep.subr.mxu0 0.0
    %872 = vmatpush1.msra.mxu0 0.0
    %873 = vmatprep.subr.mxu0 0.0
    %874 = vmatpush1.msra.mxu0 0.0
    %875 = vmatprep.subr.mxu0 0.0
    %876 = vmatpush1.msra.mxu0 0.0
    %877 = vmatprep.subr.mxu0 0.0
    %878 = vmatpush1.msra.mxu0 0.0
    %879 = vmatprep.subr.mxu0 0.0
    %880 = vmatpush1.msra.mxu0 0.0
    %881 = vmatprep.subr.mxu0 0.0
    %882 = vmatpush1.msra.mxu0 0.0
    %883 = vmatprep.mubr.f32.mxu0 0.0
    %884 = vmatmul.mubr.f32.gmra.mrb[0].mxu0 %v817
    %v885 = vpop.f32.mrb[0].mxu0
    %v886 = vadd.f32 0.0, %v885
    %v887 = vpop.f32.mrb[0].mxu0
    %888 = vdwg.mxu0
    %v889 = vadd.f32 %v816, %v886
    %v890 = vxor.u32 %v889, 2147483648
    %v891 = vmul.f32 %v890, 1.442695
    %v892 = vpow.pop %v891
    %v893 = vadd.f32 %v892, 1.0
    %v894 = vrcp.pop %v893
    %v895 = vmul.f32 1.0, %v894
    %v896 = vtanh.pop %v889
    %v897 = vmul.f32 %v895, %v804
    %899 = vrot.lane.b32.xlu0 %v896, 64
    %v900 = vpop.permute.xlu0 %899
    %v902 = vmul.f32 %v895, %v900
    %904 = vrot.lane.b32.xlu0 %v902, 32
    %v905 = vpop.permute.xlu0 %904
    %v907 = vadd.f32 %v897, %v905
    %v908 = vtanh.pop %v907
    %910 = vrot.lane.b32.xlu0 %v908, 64
    %v911 = vpop.permute.xlu0 %910
    %v913 = vmul.f32 %v895, %v911
    %915 = vrot.lane.b32.xlu0 %v913, 32
    %v916 = vpop.permute.xlu0 %915
    %918 = vst.msk [vmem:[#allocation12 + $0xc] sm:$0x3] %vm299, %v916
    %v919 = vld [vmem:[#allocation2 + $0xe] sm:$0x3]
    %v920 = vsel %vm112, %v916, 0
    %922 = vmatprep.subr.mxu0 0.0
    %923 = vmatpush1.msra.mxu0 %v99
    %924 = vmatprep.subr.mxu0 0.0
    %925 = vmatpush1.msra.mxu0 %v100
    %926 = vmatprep.subr.mxu0 0.0
    %927 = vmatpush1.msra.mxu0 %v101
    %928 = vmatprep.subr.mxu0 0.0
    %929 = vmatpush1.msra.mxu0 %v102
    %930 = vmatprep.subr.mxu0 0.0
    %931 = vmatpush1.msra.mxu0 0.0
    %932 = vmatprep.subr.mxu0 0.0
    %933 = vmatpush1.msra.mxu0 0.0
    %934 = vmatprep.subr.mxu0 0.0
    %935 = vmatpush1.msra.mxu0 0.0
    %936 = vmatprep.subr.mxu0 0.0
    %937 = vmatpush1.msra.mxu0 0.0
    %938 = vmatprep.subr.mxu0 0.0
    %939 = vmatpush1.msra.mxu0 0.0
    %940 = vmatprep.subr.mxu0 0.0
    %941 = vmatpush1.msra.mxu0 0.0
    %942 = vmatprep.subr.mxu0 0.0
    %943 = vmatpush1.msra.mxu0 0.0
    %944 = vmatprep.subr.mxu0 0.0
    %945 = vmatpush1.msra.mxu0 0.0
    %946 = vmatprep.subr.mxu0 0.0
    %947 = vmatpush1.msra.mxu0 0.0
    %948 = vmatprep.subr.mxu0 0.0
    %949 = vmatpush1.msra.mxu0 0.0
    %950 = vmatprep.subr.mxu0 0.0
    %951 = vmatpush1.msra.mxu0 0.0
    %952 = vmatprep.subr.mxu0 0.0
    %953 = vmatpush1.msra.mxu0 0.0
    %954 = vmatprep.subr.mxu0 0.0
    %955 = vmatpush1.msra.mxu0 0.0
    %956 = vmatprep.subr.mxu0 0.0
    %957 = vmatpush1.msra.mxu0 0.0
    %958 = vmatprep.subr.mxu0 0.0
    %959 = vmatpush1.msra.mxu0 0.0
    %960 = vmatprep.subr.mxu0 0.0
    %961 = vmatpush1.msra.mxu0 0.0
    %962 = vmatprep.subr.mxu0 0.0
    %963 = vmatpush1.msra.mxu0 0.0
    %964 = vmatprep.subr.mxu0 0.0
    %965 = vmatpush1.msra.mxu0 0.0
    %966 = vmatprep.subr.mxu0 0.0
    %967 = vmatpush1.msra.mxu0 0.0
    %968 = vmatprep.subr.mxu0 0.0
    %969 = vmatpush1.msra.mxu0 0.0
    %970 = vmatprep.subr.mxu0 0.0
    %971 = vmatpush1.msra.mxu0 0.0
    %972 = vmatprep.subr.mxu0 0.0
    %973 = vmatpush1.msra.mxu0 0.0
    %974 = vmatprep.subr.mxu0 0.0
    %975 = vmatpush1.msra.mxu0 0.0
    %976 = vmatprep.subr.mxu0 0.0
    %977 = vmatpush1.msra.mxu0 0.0
    %978 = vmatprep.subr.mxu0 0.0
    %979 = vmatpush1.msra.mxu0 0.0
    %980 = vmatprep.subr.mxu0 0.0
    %981 = vmatpush1.msra.mxu0 0.0
    %982 = vmatprep.subr.mxu0 0.0
    %983 = vmatpush1.msra.mxu0 0.0
    %984 = vmatprep.subr.mxu0 0.0
    %985 = vmatpush1.msra.mxu0 0.0
    %986 = vmatprep.mubr.f32.mxu0 0.0
    %987 = vmatmul.mubr.f32.gmra.mrb[0].mxu0 %v920
    %v988 = vpop.f32.mrb[0].mxu0
    %v989 = vadd.f32 0.0, %v988
    %v990 = vpop.f32.mrb[0].mxu0
    %991 = vdwg.mxu0
    %v992 = vadd.f32 %v919, %v989
    %v993 = vxor.u32 %v992, 2147483648
    %v994 = vmul.f32 %v993, 1.442695
    %v995 = vpow.pop %v994
    %v996 = vadd.f32 %v995, 1.0
    %v997 = vrcp.pop %v996
    %v998 = vmul.f32 1.0, %v997
    %v999 = vtanh.pop %v992
    %v1000 = vmul.f32 %v998, %v907
    %1002 = vrot.lane.b32.xlu0 %v999, 64
    %v1003 = vpop.permute.xlu0 %1002
    %v1005 = vmul.f32 %v998, %v1003
    %1007 = vrot.lane.b32.xlu0 %v1005, 32
    %v1008 = vpop.permute.xlu0 %1007
    %v1010 = vadd.f32 %v1000, %v1008
    %v1011 = vtanh.pop %v1010
    %1013 = vrot.lane.b32.xlu0 %v1011, 64
    %v1014 = vpop.permute.xlu0 %1013
    %v1016 = vmul.f32 %v998, %v1014
    %1018 = vrot.lane.b32.xlu0 %v1016, 32
    %v1019 = vpop.permute.xlu0 %1018
    %1021 = vst.msk [vmem:[#allocation12 + $0xe] sm:$0x3] %vm299, %v1019
    %v1022 = vld [vmem:[#allocation9] sm:$0xff]
    %v1023 = vld [vmem:[#allocation9 + $0x8] sm:$0xff]
    %v1024 = vld [vmem:[#allocation9 + $0x10] sm:$0xff]
    %v1025 = vld [vmem:[#allocation9 + $0x18] sm:$0xff]
    %v1026 = vld [vmem:[#allocation11] sm:$0xff]
    %v1027 = vld [vmem:[#allocation11 + $0x8] sm:$0xff]
    %v1028 = vld [vmem:[#allocation11 + $0x10] sm:$0xff]
    %v1029 = vld [vmem:[#allocation11 + $0x18] sm:$0xff]
    %v1030 = vld [vmem:[%s6] sm:$0x1]
    %v1031 = vld [vmem:[#allocation12] sm:$0xff]
    %v1032 = vld [vmem:[#allocation12 + $0x8] sm:$0xff]
    %v1034 = vlaneseq
    %v1035 = vshrl.u32 %v1034, 7
    %v1036 = vsub.s32 0, %v1035
    %v1037 = vrot.slane %v1030, %v1036
    %v1040 = vsel %vm112, %v1031, 0
    %v1043 = vsel %vm112, %v1032, 0
    %1045 = vmatprep.subr.mxu0 0.0
    %1046 = vmatpush1.msra.mxu0 %v1022
    %1047 = vmatprep.subr.mxu0 0.0
    %1048 = vmatpush1.msra.mxu0 %v1023
    %1049 = vmatprep.subr.mxu0 0.0
    %1050 = vmatpush1.msra.mxu0 %v1024
    %1051 = vmatprep.subr.mxu0 0.0
    %1052 = vmatpush1.msra.mxu0 %v1025
    %1053 = vmatprep.subr.mxu0 0.0
    %1054 = vmatpush1.msra.mxu0 0.0
    %1055 = vmatprep.subr.mxu0 0.0
    %1056 = vmatpush1.msra.mxu0 0.0
    %1057 = vmatprep.subr.mxu0 0.0
    %1058 = vmatpush1.msra.mxu0 0.0
    %1059 = vmatprep.subr.mxu0 0.0
    %1060 = vmatpush1.msra.mxu0 0.0
    %1061 = vmatprep.subr.mxu0 0.0
    %1062 = vmatpush1.msra.mxu0 0.0
    %1063 = vmatprep.subr.mxu0 0.0
    %1064 = vmatpush1.msra.mxu0 0.0
    %1065 = vmatprep.subr.mxu0 0.0
    %1066 = vmatpush1.msra.mxu0 0.0
    %1067 = vmatprep.subr.mxu0 0.0
    %1068 = vmatpush1.msra.mxu0 0.0
    %1069 = vmatprep.subr.mxu0 0.0
    %1070 = vmatpush1.msra.mxu0 0.0
    %1071 = vmatprep.subr.mxu0 0.0
    %1072 = vmatpush1.msra.mxu0 0.0
    %1073 = vmatprep.subr.mxu0 0.0
    %1074 = vmatpush1.msra.mxu0 0.0
    %1075 = vmatprep.subr.mxu0 0.0
    %1076 = vmatpush1.msra.mxu0 0.0
    %1077 = vmatprep.subr.mxu0 0.0
    %1078 = vmatpush1.msra.mxu0 0.0
    %1079 = vmatprep.subr.mxu0 0.0
    %1080 = vmatpush1.msra.mxu0 0.0
    %1081 = vmatprep.subr.mxu0 0.0
    %1082 = vmatpush1.msra.mxu0 0.0
    %1083 = vmatprep.subr.mxu0 0.0
    %1084 = vmatpush1.msra.mxu0 0.0
    %1085 = vmatprep.subr.mxu0 0.0
    %1086 = vmatpush1.msra.mxu0 0.0
    %1087 = vmatprep.subr.mxu0 0.0
    %1088 = vmatpush1.msra.mxu0 0.0
    %1089 = vmatprep.subr.mxu0 0.0
    %1090 = vmatpush1.msra.mxu0 0.0
    %1091 = vmatprep.subr.mxu0 0.0
    %1092 = vmatpush1.msra.mxu0 0.0
    %1093 = vmatprep.subr.mxu0 0.0
    %1094 = vmatpush1.msra.mxu0 0.0
    %1095 = vmatprep.subr.mxu0 0.0
    %1096 = vmatpush1.msra.mxu0 0.0
    %1097 = vmatprep.subr.mxu0 0.0
    %1098 = vmatpush1.msra.mxu0 0.0
    %1099 = vmatprep.subr.mxu0 0.0
    %1100 = vmatpush1.msra.mxu0 0.0
    %1101 = vmatprep.subr.mxu0 0.0
    %1102 = vmatpush1.msra.mxu0 0.0
    %1103 = vmatprep.subr.mxu0 0.0
    %1104 = vmatpush1.msra.mxu0 0.0
    %1105 = vmatprep.subr.mxu0 0.0
    %1106 = vmatpush1.msra.mxu0 0.0
    %1107 = vmatprep.subr.mxu0 0.0
    %1108 = vmatpush1.msra.mxu0 0.0
    %1109 = vmatprep.mubr.f32.mxu0 0.0
    %1110 = vmatmul.mubr.f32.gmra.mrb[0].mxu0 %v1040
    %v1111 = vpop.f32.mrb[0].mxu0
    %v1112 = vadd.f32 %v1037, %v1111
    %v1113 = vpop.f32.mrb[0].mxu0
    %1114 = vmatprep.mubr.f32.mxu0 0.0
    %1115 = vmatmul.mubr.f32.gmra.mrb[0].mxu0 %v1043
    %v1116 = vpop.f32.mrb[0].mxu0
    %v1117 = vadd.f32 %v1037, %v1116
    %v1118 = vpop.f32.mrb[0].mxu0
    %1119 = vdwg.mxu0
    %1120 = vst [vmem:[#allocation2] sm:$0xff] %v1112
    %1121 = vst [vmem:[#allocation2 + $0x8] sm:$0xff] %v1117
    %v1122 = vld [vmem:[#allocation2] sm:$0x3]
    %1123 = vmatprep.subr.mxu0 0.0
    %1124 = vmatpush1.msra.mxu0 %v1026
    %1125 = vmatprep.subr.mxu0 0.0
    %1126 = vmatpush1.msra.mxu0 %v1027
    %1127 = vmatprep.subr.mxu0 0.0
    %1128 = vmatpush1.msra.mxu0 %v1028
    %1129 = vmatprep.subr.mxu0 0.0
    %1130 = vmatpush1.msra.mxu0 %v1029
    %1131 = vmatprep.subr.mxu0 0.0
    %1132 = vmatpush1.msra.mxu0 0.0
    %1133 = vmatprep.subr.mxu0 0.0
    %1134 = vmatpush1.msra.mxu0 0.0
    %1135 = vmatprep.subr.mxu0 0.0
    %1136 = vmatpush1.msra.mxu0 0.0
    %1137 = vmatprep.subr.mxu0 0.0
    %1138 = vmatpush1.msra.mxu0 0.0
    %1139 = vmatprep.subr.mxu0 0.0
    %1140 = vmatpush1.msra.mxu0 0.0
    %1141 = vmatprep.subr.mxu0 0.0
    %1142 = vmatpush1.msra.mxu0 0.0
    %1143 = vmatprep.subr.mxu0 0.0
    %1144 = vmatpush1.msra.mxu0 0.0
    %1145 = vmatprep.subr.mxu0 0.0
    %1146 = vmatpush1.msra.mxu0 0.0
    %1147 = vmatprep.subr.mxu0 0.0
    %1148 = vmatpush1.msra.mxu0 0.0
    %1149 = vmatprep.subr.mxu0 0.0
    %1150 = vmatpush1.msra.mxu0 0.0
    %1151 = vmatprep.subr.mxu0 0.0
    %1152 = vmatpush1.msra.mxu0 0.0
    %1153 = vmatprep.subr.mxu0 0.0
    %1154 = vmatpush1.msra.mxu0 0.0
    %1155 = vmatprep.subr.mxu0 0.0
    %1156 = vmatpush1.msra.mxu0 0.0
    %1157 = vmatprep.subr.mxu0 0.0
    %1158 = vmatpush1.msra.mxu0 0.0
    %1159 = vmatprep.subr.mxu0 0.0
    %1160 = vmatpush1.msra.mxu0 0.0
    %1161 = vmatprep.subr.mxu0 0.0
    %1162 = vmatpush1.msra.mxu0 0.0
    %1163 = vmatprep.subr.mxu0 0.0
    %1164 = vmatpush1.msra.mxu0 0.0
    %1165 = vmatprep.subr.mxu0 0.0
    %1166 = vmatpush1.msra.mxu0 0.0
    %1167 = vmatprep.subr.mxu0 0.0
    %1168 = vmatpush1.msra.mxu0 0.0
    %1169 = vmatprep.subr.mxu0 0.0
    %1170 = vmatpush1.msra.mxu0 0.0
    %1171 = vmatprep.subr.mxu0 0.0
    %1172 = vmatpush1.msra.mxu0 0.0
    %1173 = vmatprep.subr.mxu0 0.0
    %1174 = vmatpush1.msra.mxu0 0.0
    %1175 = vmatprep.subr.mxu0 0.0
    %1176 = vmatpush1.msra.mxu0 0.0
    %1177 = vmatprep.subr.mxu0 0.0
    %1178 = vmatpush1.msra.mxu0 0.0
    %1179 = vmatprep.subr.mxu0 0.0
    %1180 = vmatpush1.msra.mxu0 0.0
    %1181 = vmatprep.subr.mxu0 0.0
    %1182 = vmatpush1.msra.mxu0 0.0
    %1183 = vmatprep.subr.mxu0 0.0
    %1184 = vmatpush1.msra.mxu0 0.0
    %1185 = vmatprep.subr.mxu0 0.0
    %1186 = vmatpush1.msra.mxu0 0.0
    %1187 = vmatprep.mubr.f32.mxu0 0.0
    %1188 = vmatmul.mubr.f32.gmra.mrb[0].mxu0 %v198
    %v1189 = vpop.f32.mrb[0].mxu0
    %v1190 = vadd.f32 0.0, %v1189
    %v1191 = vpop.f32.mrb[0].mxu0
    %1192 = vdwg.mxu0
    %v1193 = vadd.f32 %v1122, %v1190
    %v1194 = vxor.u32 %v1193, 2147483648
    %v1195 = vmul.f32 %v1194, 1.442695
    %v1196 = vpow.pop %v1195
    %v1197 = vadd.f32 %v1196, 1.0
    %v1198 = vrcp.pop %v1197
    %v1199 = vmul.f32 1.0, %v1198
    %v1200 = vtanh.pop %v1193
    %v1201 = vmul.f32 %v1199, 0.0
    %1203 = vrot.lane.b32.xlu0 %v1200, 64
    %v1204 = vpop.permute.xlu0 %1203
    %v1206 = vmul.f32 %v1199, %v1204
    %1208 = vrot.lane.b32.xlu0 %v1206, 32
    %v1209 = vpop.permute.xlu0 %1208
    %v1211 = vadd.f32 %v1201, %v1209
    %v1212 = vtanh.pop %v1211
    %1214 = vrot.lane.b32.xlu0 %v1212, 64
    %v1215 = vpop.permute.xlu0 %1214
    %v1217 = vmul.f32 %v1199, %v1215
    %1219 = vrot.lane.b32.xlu0 %v1217, 32
    %v1220 = vpop.permute.xlu0 %1219
    %1222 = vst.msk [vmem:[#allocation12] sm:$0x3] %vm299, %v1220
    %v1223 = vld [vmem:[#allocation2 + $0x2] sm:$0x3]
    %v1224 = vsel %vm112, %v1220, 0
    %1226 = vmatprep.subr.mxu0 0.0
    %1227 = vmatpush1.msra.mxu0 %v1026
    %1228 = vmatprep.subr.mxu0 0.0
    %1229 = vmatpush1.msra.mxu0 %v1027
    %1230 = vmatprep.subr.mxu0 0.0
    %1231 = vmatpush1.msra.mxu0 %v1028
    %1232 = vmatprep.subr.mxu0 0.0
    %1233 = vmatpush1.msra.mxu0 %v1029
    %1234 = vmatprep.subr.mxu0 0.0
    %1235 = vmatpush1.msra.mxu0 0.0
    %1236 = vmatprep.subr.mxu0 0.0
    %1237 = vmatpush1.msra.mxu0 0.0
    %1238 = vmatprep.subr.mxu0 0.0
    %1239 = vmatpush1.msra.mxu0 0.0
    %1240 = vmatprep.subr.mxu0 0.0
    %1241 = vmatpush1.msra.mxu0 0.0
    %1242 = vmatprep.subr.mxu0 0.0
    %1243 = vmatpush1.msra.mxu0 0.0
    %1244 = vmatprep.subr.mxu0 0.0
    %1245 = vmatpush1.msra.mxu0 0.0
    %1246 = vmatprep.subr.mxu0 0.0
    %1247 = vmatpush1.msra.mxu0 0.0
    %1248 = vmatprep.subr.mxu0 0.0
    %1249 = vmatpush1.msra.mxu0 0.0
    %1250 = vmatprep.subr.mxu0 0.0
    %1251 = vmatpush1.msra.mxu0 0.0
    %1252 = vmatprep.subr.mxu0 0.0
    %1253 = vmatpush1.msra.mxu0 0.0
    %1254 = vmatprep.subr.mxu0 0.0
    %1255 = vmatpush1.msra.mxu0 0.0
    %1256 = vmatprep.subr.mxu0 0.0
    %1257 = vmatpush1.msra.mxu0 0.0
    %1258 = vmatprep.subr.mxu0 0.0
    %1259 = vmatpush1.msra.mxu0 0.0
    %1260 = vmatprep.subr.mxu0 0.0
    %1261 = vmatpush1.msra.mxu0 0.0
    %1262 = vmatprep.subr.mxu0 0.0
    %1263 = vmatpush1.msra.mxu0 0.0
    %1264 = vmatprep.subr.mxu0 0.0
    %1265 = vmatpush1.msra.mxu0 0.0
    %1266 = vmatprep.subr.mxu0 0.0
    %1267 = vmatpush1.msra.mxu0 0.0
    %1268 = vmatprep.subr.mxu0 0.0
    %1269 = vmatpush1.msra.mxu0 0.0
    %1270 = vmatprep.subr.mxu0 0.0
    %1271 = vmatpush1.msra.mxu0 0.0
    %1272 = vmatprep.subr.mxu0 0.0
    %1273 = vmatpush1.msra.mxu0 0.0
    %1274 = vmatprep.subr.mxu0 0.0
    %1275 = vmatpush1.msra.mxu0 0.0
    %1276 = vmatprep.subr.mxu0 0.0
    %1277 = vmatpush1.msra.mxu0 0.0
    %1278 = vmatprep.subr.mxu0 0.0
    %1279 = vmatpush1.msra.mxu0 0.0
    %1280 = vmatprep.subr.mxu0 0.0
    %1281 = vmatpush1.msra.mxu0 0.0
    %1282 = vmatprep.subr.mxu0 0.0
    %1283 = vmatpush1.msra.mxu0 0.0
    %1284 = vmatprep.subr.mxu0 0.0
    %1285 = vmatpush1.msra.mxu0 0.0
    %1286 = vmatprep.subr.mxu0 0.0
    %1287 = vmatpush1.msra.mxu0 0.0
    %1288 = vmatprep.subr.mxu0 0.0
    %1289 = vmatpush1.msra.mxu0 0.0
    %1290 = vmatprep.mubr.f32.mxu0 0.0
    %1291 = vmatmul.mubr.f32.gmra.mrb[0].mxu0 %v1224
    %v1292 = vpop.f32.mrb[0].mxu0
    %v1293 = vadd.f32 0.0, %v1292
    %v1294 = vpop.f32.mrb[0].mxu0
    %1295 = vdwg.mxu0
    %v1296 = vadd.f32 %v1223, %v1293
    %v1297 = vxor.u32 %v1296, 2147483648
    %v1298 = vmul.f32 %v1297, 1.442695
    %v1299 = vpow.pop %v1298
    %v1300 = vadd.f32 %v1299, 1.0
    %v1301 = vrcp.pop %v1300
    %v1302 = vmul.f32 1.0, %v1301
    %v1303 = vtanh.pop %v1296
    %v1304 = vmul.f32 %v1302, %v1211
    %1306 = vrot.lane.b32.xlu0 %v1303, 64
    %v1307 = vpop.permute.xlu0 %1306
    %v1309 = vmul.f32 %v1302, %v1307
    %1311 = vrot.lane.b32.xlu0 %v1309, 32
    %v1312 = vpop.permute.xlu0 %1311
    %v1314 = vadd.f32 %v1304, %v1312
    %v1315 = vtanh.pop %v1314
    %1317 = vrot.lane.b32.xlu0 %v1315, 64
    %v1318 = vpop.permute.xlu0 %1317
    %v1320 = vmul.f32 %v1302, %v1318
    %1322 = vrot.lane.b32.xlu0 %v1320, 32
    %v1323 = vpop.permute.xlu0 %1322
    %1325 = vst.msk [vmem:[#allocation12 + $0x2] sm:$0x3] %vm299, %v1323
    %v1326 = vld [vmem:[#allocation2 + $0x4] sm:$0x3]
    %v1327 = vsel %vm112, %v1323, 0
    %1329 = vmatprep.subr.mxu0 0.0
    %1330 = vmatpush1.msra.mxu0 %v1026
    %1331 = vmatprep.subr.mxu0 0.0
    %1332 = vmatpush1.msra.mxu0 %v1027
    %1333 = vmatprep.subr.mxu0 0.0
    %1334 = vmatpush1.msra.mxu0 %v1028
    %1335 = vmatprep.subr.mxu0 0.0
    %1336 = vmatpush1.msra.mxu0 %v1029
    %1337 = vmatprep.subr.mxu0 0.0
    %1338 = vmatpush1.msra.mxu0 0.0
    %1339 = vmatprep.subr.mxu0 0.0
    %1340 = vmatpush1.msra.mxu0 0.0
    %1341 = vmatprep.subr.mxu0 0.0
    %1342 = vmatpush1.msra.mxu0 0.0
    %1343 = vmatprep.subr.mxu0 0.0
    %1344 = vmatpush1.msra.mxu0 0.0
    %1345 = vmatprep.subr.mxu0 0.0
    %1346 = vmatpush1.msra.mxu0 0.0
    %1347 = vmatprep.subr.mxu0 0.0
    %1348 = vmatpush1.msra.mxu0 0.0
    %1349 = vmatprep.subr.mxu0 0.0
    %1350 = vmatpush1.msra.mxu0 0.0
    %1351 = vmatprep.subr.mxu0 0.0
    %1352 = vmatpush1.msra.mxu0 0.0
    %1353 = vmatprep.subr.mxu0 0.0
    %1354 = vmatpush1.msra.mxu0 0.0
    %1355 = vmatprep.subr.mxu0 0.0
    %1356 = vmatpush1.msra.mxu0 0.0
    %1357 = vmatprep.subr.mxu0 0.0
    %1358 = vmatpush1.msra.mxu0 0.0
    %1359 = vmatprep.subr.mxu0 0.0
    %1360 = vmatpush1.msra.mxu0 0.0
    %1361 = vmatprep.subr.mxu0 0.0
    %1362 = vmatpush1.msra.mxu0 0.0
    %1363 = vmatprep.subr.mxu0 0.0
    %1364 = vmatpush1.msra.mxu0 0.0
    %1365 = vmatprep.subr.mxu0 0.0
    %1366 = vmatpush1.msra.mxu0 0.0
    %1367 = vmatprep.subr.mxu0 0.0
    %1368 = vmatpush1.msra.mxu0 0.0
    %1369 = vmatprep.subr.mxu0 0.0
    %1370 = vmatpush1.msra.mxu0 0.0
    %1371 = vmatprep.subr.mxu0 0.0
    %1372 = vmatpush1.msra.mxu0 0.0
    %1373 = vmatprep.subr.mxu0 0.0
    %1374 = vmatpush1.msra.mxu0 0.0
    %1375 = vmatprep.subr.mxu0 0.0
    %1376 = vmatpush1.msra.mxu0 0.0
    %1377 = vmatprep.subr.mxu0 0.0
    %1378 = vmatpush1.msra.mxu0 0.0
    %1379 = vmatprep.subr.mxu0 0.0
    %1380 = vmatpush1.msra.mxu0 0.0
    %1381 = vmatprep.subr.mxu0 0.0
    %1382 = vmatpush1.msra.mxu0 0.0
    %1383 = vmatprep.subr.mxu0 0.0
    %1384 = vmatpush1.msra.mxu0 0.0
    %1385 = vmatprep.subr.mxu0 0.0
    %1386 = vmatpush1.msra.mxu0 0.0
    %1387 = vmatprep.subr.mxu0 0.0
    %1388 = vmatpush1.msra.mxu0 0.0
    %1389 = vmatprep.subr.mxu0 0.0
    %1390 = vmatpush1.msra.mxu0 0.0
    %1391 = vmatprep.subr.mxu0 0.0
    %1392 = vmatpush1.msra.mxu0 0.0
    %1393 = vmatprep.mubr.f32.mxu0 0.0
    %1394 = vmatmul.mubr.f32.gmra.mrb[0].mxu0 %v1327
    %v1395 = vpop.f32.mrb[0].mxu0
    %v1396 = vadd.f32 0.0, %v1395
    %v1397 = vpop.f32.mrb[0].mxu0
    %1398 = vdwg.mxu0
    %v1399 = vadd.f32 %v1326, %v1396
    %v1400 = vxor.u32 %v1399, 2147483648
    %v1401 = vmul.f32 %v1400, 1.442695
    %v1402 = vpow.pop %v1401
    %v1403 = vadd.f32 %v1402, 1.0
    %v1404 = vrcp.pop %v1403
    %v1405 = vmul.f32 1.0, %v1404
    %v1406 = vtanh.pop %v1399
    %v1407 = vmul.f32 %v1405, %v1314
    %1409 = vrot.lane.b32.xlu0 %v1406, 64
    %v1410 = vpop.permute.xlu0 %1409
    %v1412 = vmul.f32 %v1405, %v1410
    %1414 = vrot.lane.b32.xlu0 %v1412, 32
    %v1415 = vpop.permute.xlu0 %1414
    %v1417 = vadd.f32 %v1407, %v1415
    %v1418 = vtanh.pop %v1417
    %1420 = vrot.lane.b32.xlu0 %v1418, 64
    %v1421 = vpop.permute.xlu0 %1420
    %v1423 = vmul.f32 %v1405, %v1421
    %1425 = vrot.lane.b32.xlu0 %v1423, 32
    %v1426 = vpop.permute.xlu0 %1425
    %1428 = vst.msk [vmem:[#allocation12 + $0x4] sm:$0x3] %vm299, %v1426
    %v1429 = vld [vmem:[#allocation2 + $0x6] sm:$0x3]
    %v1430 = vsel %vm112, %v1426, 0
    %1432 = vmatprep.subr.mxu0 0.0
    %1433 = vmatpush1.msra.mxu0 %v1026
    %1434 = vmatprep.subr.mxu0 0.0
    %1435 = vmatpush1.msra.mxu0 %v1027
    %1436 = vmatprep.subr.mxu0 0.0
    %1437 = vmatpush1.msra.mxu0 %v1028
    %1438 = vmatprep.subr.mxu0 0.0
    %1439 = vmatpush1.msra.mxu0 %v1029
    %1440 = vmatprep.subr.mxu0 0.0
    %1441 = vmatpush1.msra.mxu0 0.0
    %1442 = vmatprep.subr.mxu0 0.0
    %1443 = vmatpush1.msra.mxu0 0.0
    %1444 = vmatprep.subr.mxu0 0.0
    %1445 = vmatpush1.msra.mxu0 0.0
    %1446 = vmatprep.subr.mxu0 0.0
    %1447 = vmatpush1.msra.mxu0 0.0
    %1448 = vmatprep.subr.mxu0 0.0
    %1449 = vmatpush1.msra.mxu0 0.0
    %1450 = vmatprep.subr.mxu0 0.0
    %1451 = vmatpush1.msra.mxu0 0.0
    %1452 = vmatprep.subr.mxu0 0.0
    %1453 = vmatpush1.msra.mxu0 0.0
    %1454 = vmatprep.subr.mxu0 0.0
    %1455 = vmatpush1.msra.mxu0 0.0
    %1456 = vmatprep.subr.mxu0 0.0
    %1457 = vmatpush1.msra.mxu0 0.0
    %1458 = vmatprep.subr.mxu0 0.0
    %1459 = vmatpush1.msra.mxu0 0.0
    %1460 = vmatprep.subr.mxu0 0.0
    %1461 = vmatpush1.msra.mxu0 0.0
    %1462 = vmatprep.subr.mxu0 0.0
    %1463 = vmatpush1.msra.mxu0 0.0
    %1464 = vmatprep.subr.mxu0 0.0
    %1465 = vmatpush1.msra.mxu0 0.0
    %1466 = vmatprep.subr.mxu0 0.0
    %1467 = vmatpush1.msra.mxu0 0.0
    %1468 = vmatprep.subr.mxu0 0.0
    %1469 = vmatpush1.msra.mxu0 0.0
    %1470 = vmatprep.subr.mxu0 0.0
    %1471 = vmatpush1.msra.mxu0 0.0
    %1472 = vmatprep.subr.mxu0 0.0
    %1473 = vmatpush1.msra.mxu0 0.0
    %1474 = vmatprep.subr.mxu0 0.0
    %1475 = vmatpush1.msra.mxu0 0.0
    %1476 = vmatprep.subr.mxu0 0.0
    %1477 = vmatpush1.msra.mxu0 0.0
    %1478 = vmatprep.subr.mxu0 0.0
    %1479 = vmatpush1.msra.mxu0 0.0
    %1480 = vmatprep.subr.mxu0 0.0
    %1481 = vmatpush1.msra.mxu0 0.0
    %1482 = vmatprep.subr.mxu0 0.0
    %1483 = vmatpush1.msra.mxu0 0.0
    %1484 = vmatprep.subr.mxu0 0.0
    %1485 = vmatpush1.msra.mxu0 0.0
    %1486 = vmatprep.subr.mxu0 0.0
    %1487 = vmatpush1.msra.mxu0 0.0
    %1488 = vmatprep.subr.mxu0 0.0
    %1489 = vmatpush1.msra.mxu0 0.0
    %1490 = vmatprep.subr.mxu0 0.0
    %1491 = vmatpush1.msra.mxu0 0.0
    %1492 = vmatprep.subr.mxu0 0.0
    %1493 = vmatpush1.msra.mxu0 0.0
    %1494 = vmatprep.subr.mxu0 0.0
    %1495 = vmatpush1.msra.mxu0 0.0
    %1496 = vmatprep.mubr.f32.mxu0 0.0
    %1497 = vmatmul.mubr.f32.gmra.mrb[0].mxu0 %v1430
    %v1498 = vpop.f32.mrb[0].mxu0
    %v1499 = vadd.f32 0.0, %v1498
    %v1500 = vpop.f32.mrb[0].mxu0
    %1501 = vdwg.mxu0
    %v1502 = vadd.f32 %v1429, %v1499
    %v1503 = vxor.u32 %v1502, 2147483648
    %v1504 = vmul.f32 %v1503, 1.442695
    %v1505 = vpow.pop %v1504
    %v1506 = vadd.f32 %v1505, 1.0
    %v1507 = vrcp.pop %v1506
    %v1508 = vmul.f32 1.0, %v1507
    %v1509 = vtanh.pop %v1502
    %v1510 = vmul.f32 %v1508, %v1417
    %1512 = vrot.lane.b32.xlu0 %v1509, 64
    %v1513 = vpop.permute.xlu0 %1512
    %v1515 = vmul.f32 %v1508, %v1513
    %1517 = vrot.lane.b32.xlu0 %v1515, 32
    %v1518 = vpop.permute.xlu0 %1517
    %v1520 = vadd.f32 %v1510, %v1518
    %v1521 = vtanh.pop %v1520
    %1523 = vrot.lane.b32.xlu0 %v1521, 64
    %v1524 = vpop.permute.xlu0 %1523
    %v1526 = vmul.f32 %v1508, %v1524
    %1528 = vrot.lane.b32.xlu0 %v1526, 32
    %v1529 = vpop.permute.xlu0 %1528
    %1531 = vst.msk [vmem:[#allocation12 + $0x6] sm:$0x3] %vm299, %v1529
    %v1532 = vld [vmem:[#allocation2 + $0x8] sm:$0x3]
    %v1533 = vsel %vm112, %v1529, 0
    %1535 = vmatprep.subr.mxu0 0.0
    %1536 = vmatpush1.msra.mxu0 %v1026
    %1537 = vmatprep.subr.mxu0 0.0
    %1538 = vmatpush1.msra.mxu0 %v1027
    %1539 = vmatprep.subr.mxu0 0.0
    %1540 = vmatpush1.msra.mxu0 %v1028
    %1541 = vmatprep.subr.mxu0 0.0
    %1542 = vmatpush1.msra.mxu0 %v1029
    %1543 = vmatprep.subr.mxu0 0.0
    %1544 = vmatpush1.msra.mxu0 0.0
    %1545 = vmatprep.subr.mxu0 0.0
    %1546 = vmatpush1.msra.mxu0 0.0
    %1547 = vmatprep.subr.mxu0 0.0
    %1548 = vmatpush1.msra.mxu0 0.0
    %1549 = vmatprep.subr.mxu0 0.0
    %1550 = vmatpush1.msra.mxu0 0.0
    %1551 = vmatprep.subr.mxu0 0.0
    %1552 = vmatpush1.msra.mxu0 0.0
    %1553 = vmatprep.subr.mxu0 0.0
    %1554 = vmatpush1.msra.mxu0 0.0
    %1555 = vmatprep.subr.mxu0 0.0
    %1556 = vmatpush1.msra.mxu0 0.0
    %1557 = vmatprep.subr.mxu0 0.0
    %1558 = vmatpush1.msra.mxu0 0.0
    %1559 = vmatprep.subr.mxu0 0.0
    %1560 = vmatpush1.msra.mxu0 0.0
    %1561 = vmatprep.subr.mxu0 0.0
    %1562 = vmatpush1.msra.mxu0 0.0
    %1563 = vmatprep.subr.mxu0 0.0
    %1564 = vmatpush1.msra.mxu0 0.0
    %1565 = vmatprep.subr.mxu0 0.0
    %1566 = vmatpush1.msra.mxu0 0.0
    %1567 = vmatprep.subr.mxu0 0.0
    %1568 = vmatpush1.msra.mxu0 0.0
    %1569 = vmatprep.subr.mxu0 0.0
    %1570 = vmatpush1.msra.mxu0 0.0
    %1571 = vmatprep.subr.mxu0 0.0
    %1572 = vmatpush1.msra.mxu0 0.0
    %1573 = vmatprep.subr.mxu0 0.0
    %1574 = vmatpush1.msra.mxu0 0.0
    %1575 = vmatprep.subr.mxu0 0.0
    %1576 = vmatpush1.msra.mxu0 0.0
    %1577 = vmatprep.subr.mxu0 0.0
    %1578 = vmatpush1.msra.mxu0 0.0
    %1579 = vmatprep.subr.mxu0 0.0
    %1580 = vmatpush1.msra.mxu0 0.0
    %1581 = vmatprep.subr.mxu0 0.0
    %1582 = vmatpush1.msra.mxu0 0.0
    %1583 = vmatprep.subr.mxu0 0.0
    %1584 = vmatpush1.msra.mxu0 0.0
    %1585 = vmatprep.subr.mxu0 0.0
    %1586 = vmatpush1.msra.mxu0 0.0
    %1587 = vmatprep.subr.mxu0 0.0
    %1588 = vmatpush1.msra.mxu0 0.0
    %1589 = vmatprep.subr.mxu0 0.0
    %1590 = vmatpush1.msra.mxu0 0.0
    %1591 = vmatprep.subr.mxu0 0.0
    %1592 = vmatpush1.msra.mxu0 0.0
    %1593 = vmatprep.subr.mxu0 0.0
    %1594 = vmatpush1.msra.mxu0 0.0
    %1595 = vmatprep.subr.mxu0 0.0
    %1596 = vmatpush1.msra.mxu0 0.0
    %1597 = vmatprep.subr.mxu0 0.0
    %1598 = vmatpush1.msra.mxu0 0.0
    %1599 = vmatprep.mubr.f32.mxu0 0.0
    %1600 = vmatmul.mubr.f32.gmra.mrb[0].mxu0 %v1533
    %v1601 = vpop.f32.mrb[0].mxu0
    %v1602 = vadd.f32 0.0, %v1601
    %v1603 = vpop.f32.mrb[0].mxu0
    %1604 = vdwg.mxu0
    %v1605 = vadd.f32 %v1532, %v1602
    %v1606 = vxor.u32 %v1605, 2147483648
    %v1607 = vmul.f32 %v1606, 1.442695
    %v1608 = vpow.pop %v1607
    %v1609 = vadd.f32 %v1608, 1.0
    %v1610 = vrcp.pop %v1609
    %v1611 = vmul.f32 1.0, %v1610
    %v1612 = vtanh.pop %v1605
    %v1613 = vmul.f32 %v1611, %v1520
    %1615 = vrot.lane.b32.xlu0 %v1612, 64
    %v1616 = vpop.permute.xlu0 %1615
    %v1618 = vmul.f32 %v1611, %v1616
    %1620 = vrot.lane.b32.xlu0 %v1618, 32
    %v1621 = vpop.permute.xlu0 %1620
    %v1623 = vadd.f32 %v1613, %v1621
    %v1624 = vtanh.pop %v1623
    %1626 = vrot.lane.b32.xlu0 %v1624, 64
    %v1627 = vpop.permute.xlu0 %1626
    %v1629 = vmul.f32 %v1611, %v1627
    %1631 = vrot.lane.b32.xlu0 %v1629, 32
    %v1632 = vpop.permute.xlu0 %1631
    %1634 = vst.msk [vmem:[#allocation12 + $0x8] sm:$0x3] %vm299, %v1632
    %v1635 = vld [vmem:[#allocation2 + $0xa] sm:$0x3]
    %v1636 = vsel %vm112, %v1632, 0
    %1638 = vmatprep.subr.mxu0 0.0
    %1639 = vmatpush1.msra.mxu0 %v1026
    %1640 = vmatprep.subr.mxu0 0.0
    %1641 = vmatpush1.msra.mxu0 %v1027
    %1642 = vmatprep.subr.mxu0 0.0
    %1643 = vmatpush1.msra.mxu0 %v1028
    %1644 = vmatprep.subr.mxu0 0.0
    %1645 = vmatpush1.msra.mxu0 %v1029
    %1646 = vmatprep.subr.mxu0 0.0
    %1647 = vmatpush1.msra.mxu0 0.0
    %1648 = vmatprep.subr.mxu0 0.0
    %1649 = vmatpush1.msra.mxu0 0.0
    %1650 = vmatprep.subr.mxu0 0.0
    %1651 = vmatpush1.msra.mxu0 0.0
    %1652 = vmatprep.subr.mxu0 0.0
    %1653 = vmatpush1.msra.mxu0 0.0
    %1654 = vmatprep.subr.mxu0 0.0
    %1655 = vmatpush1.msra.mxu0 0.0
    %1656 = vmatprep.subr.mxu0 0.0
    %1657 = vmatpush1.msra.mxu0 0.0
    %1658 = vmatprep.subr.mxu0 0.0
    %1659 = vmatpush1.msra.mxu0 0.0
    %1660 = vmatprep.subr.mxu0 0.0
    %1661 = vmatpush1.msra.mxu0 0.0
    %1662 = vmatprep.subr.mxu0 0.0
    %1663 = vmatpush1.msra.mxu0 0.0
    %1664 = vmatprep.subr.mxu0 0.0
    %1665 = vmatpush1.msra.mxu0 0.0
    %1666 = vmatprep.subr.mxu0 0.0
    %1667 = vmatpush1.msra.mxu0 0.0
    %1668 = vmatprep.subr.mxu0 0.0
    %1669 = vmatpush1.msra.mxu0 0.0
    %1670 = vmatprep.subr.mxu0 0.0
    %1671 = vmatpush1.msra.mxu0 0.0
    %1672 = vmatprep.subr.mxu0 0.0
    %1673 = vmatpush1.msra.mxu0 0.0
    %1674 = vmatprep.subr.mxu0 0.0
    %1675 = vmatpush1.msra.mxu0 0.0
    %1676 = vmatprep.subr.mxu0 0.0
    %1677 = vmatpush1.msra.mxu0 0.0
    %1678 = vmatprep.subr.mxu0 0.0
    %1679 = vmatpush1.msra.mxu0 0.0
    %1680 = vmatprep.subr.mxu0 0.0
    %1681 = vmatpush1.msra.mxu0 0.0
    %1682 = vmatprep.subr.mxu0 0.0
    %1683 = vmatpush1.msra.mxu0 0.0
    %1684 = vmatprep.subr.mxu0 0.0
    %1685 = vmatpush1.msra.mxu0 0.0
    %1686 = vmatprep.subr.mxu0 0.0
    %1687 = vmatpush1.msra.mxu0 0.0
    %1688 = vmatprep.subr.mxu0 0.0
    %1689 = vmatpush1.msra.mxu0 0.0
    %1690 = vmatprep.subr.mxu0 0.0
    %1691 = vmatpush1.msra.mxu0 0.0
    %1692 = vmatprep.subr.mxu0 0.0
    %1693 = vmatpush1.msra.mxu0 0.0
    %1694 = vmatprep.subr.mxu0 0.0
    %1695 = vmatpush1.msra.mxu0 0.0
    %1696 = vmatprep.subr.mxu0 0.0
    %1697 = vmatpush1.msra.mxu0 0.0
    %1698 = vmatprep.subr.mxu0 0.0
    %1699 = vmatpush1.msra.mxu0 0.0
    %1700 = vmatprep.subr.mxu0 0.0
    %1701 = vmatpush1.msra.mxu0 0.0
    %1702 = vmatprep.mubr.f32.mxu0 0.0
    %1703 = vmatmul.mubr.f32.gmra.mrb[0].mxu0 %v1636
    %v1704 = vpop.f32.mrb[0].mxu0
    %v1705 = vadd.f32 0.0, %v1704
    %v1706 = vpop.f32.mrb[0].mxu0
    %1707 = vdwg.mxu0
    %v1708 = vadd.f32 %v1635, %v1705
    %v1709 = vxor.u32 %v1708, 2147483648
    %v1710 = vmul.f32 %v1709, 1.442695
    %v1711 = vpow.pop %v1710
    %v1712 = vadd.f32 %v1711, 1.0
    %v1713 = vrcp.pop %v1712
    %v1714 = vmul.f32 1.0, %v1713
    %v1715 = vtanh.pop %v1708
    %v1716 = vmul.f32 %v1714, %v1623
    %1718 = vrot.lane.b32.xlu0 %v1715, 64
    %v1719 = vpop.permute.xlu0 %1718
    %v1721 = vmul.f32 %v1714, %v1719
    %1723 = vrot.lane.b32.xlu0 %v1721, 32
    %v1724 = vpop.permute.xlu0 %1723
    %v1726 = vadd.f32 %v1716, %v1724
    %v1727 = vtanh.pop %v1726
    %1729 = vrot.lane.b32.xlu0 %v1727, 64
    %v1730 = vpop.permute.xlu0 %1729
    %v1732 = vmul.f32 %v1714, %v1730
    %1734 = vrot.lane.b32.xlu0 %v1732, 32
    %v1735 = vpop.permute.xlu0 %1734
    %1737 = vst.msk [vmem:[#allocation12 + $0xa] sm:$0x3] %vm299, %v1735
    %v1738 = vld [vmem:[#allocation2 + $0xc] sm:$0x3]
    %v1739 = vsel %vm112, %v1735, 0
    %1741 = vmatprep.subr.mxu0 0.0
    %1742 = vmatpush1.msra.mxu0 %v1026
    %1743 = vmatprep.subr.mxu0 0.0
    %1744 = vmatpush1.msra.mxu0 %v1027
    %1745 = vmatprep.subr.mxu0 0.0
    %1746 = vmatpush1.msra.mxu0 %v1028
    %1747 = vmatprep.subr.mxu0 0.0
    %1748 = vmatpush1.msra.mxu0 %v1029
    %1749 = vmatprep.subr.mxu0 0.0
    %1750 = vmatpush1.msra.mxu0 0.0
    %1751 = vmatprep.subr.mxu0 0.0
    %1752 = vmatpush1.msra.mxu0 0.0
    %1753 = vmatprep.subr.mxu0 0.0
    %1754 = vmatpush1.msra.mxu0 0.0
    %1755 = vmatprep.subr.mxu0 0.0
    %1756 = vmatpush1.msra.mxu0 0.0
    %1757 = vmatprep.subr.mxu0 0.0
    %1758 = vmatpush1.msra.mxu0 0.0
    %1759 = vmatprep.subr.mxu0 0.0
    %1760 = vmatpush1.msra.mxu0 0.0
    %1761 = vmatprep.subr.mxu0 0.0
    %1762 = vmatpush1.msra.mxu0 0.0
    %1763 = vmatprep.subr.mxu0 0.0
    %1764 = vmatpush1.msra.mxu0 0.0
    %1765 = vmatprep.subr.mxu0 0.0
    %1766 = vmatpush1.msra.mxu0 0.0
    %1767 = vmatprep.subr.mxu0 0.0
    %1768 = vmatpush1.msra.mxu0 0.0
    %1769 = vmatprep.subr.mxu0 0.0
    %1770 = vmatpush1.msra.mxu0 0.0
    %1771 = vmatprep.subr.mxu0 0.0
    %1772 = vmatpush1.msra.mxu0 0.0
    %1773 = vmatprep.subr.mxu0 0.0
    %1774 = vmatpush1.msra.mxu0 0.0
    %1775 = vmatprep.subr.mxu0 0.0
    %1776 = vmatpush1.msra.mxu0 0.0
    %1777 = vmatprep.subr.mxu0 0.0
    %1778 = vmatpush1.msra.mxu0 0.0
    %1779 = vmatprep.subr.mxu0 0.0
    %1780 = vmatpush1.msra.mxu0 0.0
    %1781 = vmatprep.subr.mxu0 0.0
    %1782 = vmatpush1.msra.mxu0 0.0
    %1783 = vmatprep.subr.mxu0 0.0
    %1784 = vmatpush1.msra.mxu0 0.0
    %1785 = vmatprep.subr.mxu0 0.0
    %1786 = vmatpush1.msra.mxu0 0.0
    %1787 = vmatprep.subr.mxu0 0.0
    %1788 = vmatpush1.msra.mxu0 0.0
    %1789 = vmatprep.subr.mxu0 0.0
    %1790 = vmatpush1.msra.mxu0 0.0
    %1791 = vmatprep.subr.mxu0 0.0
    %1792 = vmatpush1.msra.mxu0 0.0
    %1793 = vmatprep.subr.mxu0 0.0
    %1794 = vmatpush1.msra.mxu0 0.0
    %1795 = vmatprep.subr.mxu0 0.0
    %1796 = vmatpush1.msra.mxu0 0.0
    %1797 = vmatprep.subr.mxu0 0.0
    %1798 = vmatpush1.msra.mxu0 0.0
    %1799 = vmatprep.subr.mxu0 0.0
    %1800 = vmatpush1.msra.mxu0 0.0
    %1801 = vmatprep.subr.mxu0 0.0
    %1802 = vmatpush1.msra.mxu0 0.0
    %1803 = vmatprep.subr.mxu0 0.0
    %1804 = vmatpush1.msra.mxu0 0.0
    %1805 = vmatprep.mubr.f32.mxu0 0.0
    %1806 = vmatmul.mubr.f32.gmra.mrb[0].mxu0 %v1739
    %v1807 = vpop.f32.mrb[0].mxu0
    %v1808 = vadd.f32 0.0, %v1807
    %v1809 = vpop.f32.mrb[0].mxu0
    %1810 = vdwg.mxu0
    %v1811 = vadd.f32 %v1738, %v1808
    %v1812 = vxor.u32 %v1811, 2147483648
    %v1813 = vmul.f32 %v1812, 1.442695
    %v1814 = vpow.pop %v1813
    %v1815 = vadd.f32 %v1814, 1.0
    %v1816 = vrcp.pop %v1815
    %v1817 = vmul.f32 1.0, %v1816
    %v1818 = vtanh.pop %v1811
    %v1819 = vmul.f32 %v1817, %v1726
    %1821 = vrot.lane.b32.xlu0 %v1818, 64
    %v1822 = vpop.permute.xlu0 %1821
    %v1824 = vmul.f32 %v1817, %v1822
    %1826 = vrot.lane.b32.xlu0 %v1824, 32
    %v1827 = vpop.permute.xlu0 %1826
    %v1829 = vadd.f32 %v1819, %v1827
    %v1830 = vtanh.pop %v1829
    %1832 = vrot.lane.b32.xlu0 %v1830, 64
    %v1833 = vpop.permute.xlu0 %1832
    %v1835 = vmul.f32 %v1817, %v1833
    %1837 = vrot.lane.b32.xlu0 %v1835, 32
    %v1838 = vpop.permute.xlu0 %1837
    %1840 = vst.msk [vmem:[#allocation12 + $0xc] sm:$0x3] %vm299, %v1838
    %v1841 = vld [vmem:[#allocation2 + $0xe] sm:$0x3]
    %v1842 = vsel %vm112, %v1838, 0
    %1844 = vmatprep.subr.mxu0 0.0
    %1845 = vmatpush1.msra.mxu0 %v1026
    %1846 = vmatprep.subr.mxu0 0.0
    %1847 = vmatpush1.msra.mxu0 %v1027
    %1848 = vmatprep.subr.mxu0 0.0
    %1849 = vmatpush1.msra.mxu0 %v1028
    %1850 = vmatprep.subr.mxu0 0.0
    %1851 = vmatpush1.msra.mxu0 %v1029
    %1852 = vmatprep.subr.mxu0 0.0
    %1853 = vmatpush1.msra.mxu0 0.0
    %1854 = vmatprep.subr.mxu0 0.0
    %1855 = vmatpush1.msra.mxu0 0.0
    %1856 = vmatprep.subr.mxu0 0.0
    %1857 = vmatpush1.msra.mxu0 0.0
    %1858 = vmatprep.subr.mxu0 0.0
    %1859 = vmatpush1.msra.mxu0 0.0
    %1860 = vmatprep.subr.mxu0 0.0
    %1861 = vmatpush1.msra.mxu0 0.0
    %1862 = vmatprep.subr.mxu0 0.0
    %1863 = vmatpush1.msra.mxu0 0.0
    %1864 = vmatprep.subr.mxu0 0.0
    %1865 = vmatpush1.msra.mxu0 0.0
    %1866 = vmatprep.subr.mxu0 0.0
    %1867 = vmatpush1.msra.mxu0 0.0
    %1868 = vmatprep.subr.mxu0 0.0
    %1869 = vmatpush1.msra.mxu0 0.0
    %1870 = vmatprep.subr.mxu0 0.0
    %1871 = vmatpush1.msra.mxu0 0.0
    %1872 = vmatprep.subr.mxu0 0.0
    %1873 = vmatpush1.msra.mxu0 0.0
    %1874 = vmatprep.subr.mxu0 0.0
    %1875 = vmatpush1.msra.mxu0 0.0
    %1876 = vmatprep.subr.mxu0 0.0
    %1877 = vmatpush1.msra.mxu0 0.0
    %1878 = vmatprep.subr.mxu0 0.0
    %1879 = vmatpush1.msra.mxu0 0.0
    %1880 = vmatprep.subr.mxu0 0.0
    %1881 = vmatpush1.msra.mxu0 0.0
    %1882 = vmatprep.subr.mxu0 0.0
    %1883 = vmatpush1.msra.mxu0 0.0
    %1884 = vmatprep.subr.mxu0 0.0
    %1885 = vmatpush1.msra.mxu0 0.0
    %1886 = vmatprep.subr.mxu0 0.0
    %1887 = vmatpush1.msra.mxu0 0.0
    %1888 = vmatprep.subr.mxu0 0.0
    %1889 = vmatpush1.msra.mxu0 0.0
    %1890 = vmatprep.subr.mxu0 0.0
    %1891 = vmatpush1.msra.mxu0 0.0
    %1892 = vmatprep.subr.mxu0 0.0
    %1893 = vmatpush1.msra.mxu0 0.0
    %1894 = vmatprep.subr.mxu0 0.0
    %1895 = vmatpush1.msra.mxu0 0.0
    %1896 = vmatprep.subr.mxu0 0.0
    %1897 = vmatpush1.msra.mxu0 0.0
    %1898 = vmatprep.subr.mxu0 0.0
    %1899 = vmatpush1.msra.mxu0 0.0
    %1900 = vmatprep.subr.mxu0 0.0
    %1901 = vmatpush1.msra.mxu0 0.0
    %1902 = vmatprep.subr.mxu0 0.0
    %1903 = vmatpush1.msra.mxu0 0.0
    %1904 = vmatprep.subr.mxu0 0.0
    %1905 = vmatpush1.msra.mxu0 0.0
    %1906 = vmatprep.subr.mxu0 0.0
    %1907 = vmatpush1.msra.mxu0 0.0
    %1908 = vmatprep.mubr.f32.mxu0 0.0
    %1909 = vmatmul.mubr.f32.gmra.mrb[0].mxu0 %v1842
    %v1910 = vpop.f32.mrb[0].mxu0
    %v1911 = vadd.f32 0.0, %v1910
    %v1912 = vpop.f32.mrb[0].mxu0
    %1913 = vdwg.mxu0
    %v1914 = vadd.f32 %v1841, %v1911
    %v1915 = vxor.u32 %v1914, 2147483648
    %v1916 = vmul.f32 %v1915, 1.442695
    %v1917 = vpow.pop %v1916
    %v1918 = vadd.f32 %v1917, 1.0
    %v1919 = vrcp.pop %v1918
    %v1920 = vmul.f32 1.0, %v1919
    %v1921 = vtanh.pop %v1914
    %v1922 = vmul.f32 %v1920, %v1829
    %1924 = vrot.lane.b32.xlu0 %v1921, 64
    %v1925 = vpop.permute.xlu0 %1924
    %v1927 = vmul.f32 %v1920, %v1925
    %1929 = vrot.lane.b32.xlu0 %v1927, 32
    %v1930 = vpop.permute.xlu0 %1929
    %v1932 = vadd.f32 %v1922, %v1930
    %v1933 = vtanh.pop %v1932
    %1935 = vrot.lane.b32.xlu0 %v1933, 64
    %v1936 = vpop.permute.xlu0 %1935
    %v1938 = vmul.f32 %v1920, %v1936
    %1940 = vrot.lane.b32.xlu0 %v1938, 32
    %v1941 = vpop.permute.xlu0 %1940
    %1943 = vst.msk [vmem:[#allocation12 + $0xe] sm:$0x3] %vm299, %v1941
    // Predicated region
    $region50: #{tpu_custom_call.1} parent=1 // pred_check
      _
    $region51: #{tpu_custom_call.1} parent=1 // pred_check_branch
      %1945 = sbr.rel (0) target = $region53
    $region52: #{tpu_custom_call.1} parent=1 // pred_region
      %s1947 = ssub.s32 256, 256
      %1948 = vsyncadd [#allocation5], %s1947
      %s1949 = sshll.u32 [#allocation12], 4
      %s1950 = int_to_ptr.vmem [resolvable:$true] %s1949
      %1955 = dma.vmem_to_hbm [thread:$0]  %s1950, 256, %s7, [#allocation5], 128, 128, 8
    $region53: #{tpu_custom_call.1} parent=1 // pred_fallthru
      _
    // Predicated region
    $region54: #{tpu_custom_call.1} parent=1 // pred_check
      _
    $region55: #{tpu_custom_call.1} parent=1 // pred_check_branch
      %1957 = sbr.rel (0) target = $region57
    $region56: #{tpu_custom_call.1} parent=1 // pred_region
      %1958 = dma.done [#allocation5], 256
    $region57: #{tpu_custom_call.1} parent=1 // pred_fallthru
      _
    %1959 = vsyncpa [#allocation4], 1
    %1960 = vsyncpa [#allocation7], 1
    %1961 = vsyncpa [#allocation10], 1
    %1962 = vsyncpa [#allocation5], 1

</llo_original>
